<compile_context>
chip_gen: v7x
topology: tpu7x:2x2x1
jax: 0.10.0
libtpu: 0.0.40
codegen_flags: <defaults>
</compile_context>

<pallas_src>
import functools

import jax
import jax.numpy as jnp
from jax.experimental import pallas as pl
from jax.experimental.pallas import tpu as pltpu

EPS = 1e-6        # vn_layers.EPS
BN_EPS = 1e-5     # nn.BatchNorm1d default eps
NEG_SLOPE = 0.2   # act_fn='vn_leaky_relu'


def _fast_recip(x):
    """EUP approximate reciprocal + one Newton-Raphson refinement (near-f32 accurate)."""
    r = pl.reciprocal(x, approx=True)
    return r * (2.0 - x * r)


def _vn_leaky(p, d, neg_slope):
    """Vector-neuron leaky ReLU on v-stacked tiles. p, d: (3, M, C)."""
    dot = jnp.sum(p * d, axis=0, keepdims=True)            # (1, M, C)
    dsq = jnp.sum(d * d, axis=0, keepdims=True)            # (1, M, C)
    scale = dot * _fast_recip(dsq + EPS)
    corr = jnp.where(dot < 0, scale, 0.0)
    return p - (1.0 - neg_slope) * corr * d


def _vn_bn_leaky(p, d, gamma, beta):
    """VNBatchNorm (training-mode batch stats over all B*L rows) fused with the following
    VN leaky ReLU so the normalized p stays live in vregs. p, d: (3, M, C)."""
    norm = jnp.sqrt(jnp.sum(p * p, axis=0)) + EPS           # (M, C)
    mean = jnp.mean(norm, axis=0, keepdims=True)            # (1, C) stats over (B, L)
    var = jnp.mean((norm - mean) ** 2, axis=0, keepdims=True)
    inv_std = jax.lax.rsqrt(var + BN_EPS)
    ratio = ((norm - mean) * inv_std * gamma + beta) * _fast_recip(norm)  # shared across v
    return _vn_leaky(p * ratio[None], d, NEG_SLOPE)


def _vn_inv_attn_kernel(
    x_ref,             # (3, B*L, D)   x_k[v, b*L+l, d] = x[b, d, v, l]
    w1_ref,            # (D, 2D)       [fc1 | fc1 @ act.map_to_dir]
    wt_top_ref,        # (D, 2D+1)     [vn1_feat_top | vn1_dir_top | fc2_top]
    wt_bot_ref,        # (D, 2D+1)     [vn1_feat_bot | vn1_dir_bot | fc2_bot] (mean path)
    bn1_gamma_ref,     # (1, D)
    bn1_beta_ref,      # (1, D)
    w2_ref,            # (D, D)        [vn2_feat | vn2_dir]
    bn2_gamma_ref,     # (1, D//2)
    bn2_beta_ref,      # (1, D//2)
    w_lin_ref,         # (D//2, 3)     fused vn_lin
    out_ref,           # (3, B, D)     out[k, b, :] = attention-pooled x, component k
    *, B, L, D,
):
    V = 3
    M = B * L
    D2 = D // 2
    W = 2 * D + 1

    def mm(a, w):
        """Stacked matmul: a (3, R, Cin) x w (Cin, Cout) as one (3R, Cin) MXU call."""
        r, cin = a.shape[1], a.shape[2]
        out = jnp.dot(a.reshape(V * r, cin), w, preferred_element_type=jnp.float32)
        return out.reshape(V, r, w.shape[-1])

    # ---- uit = VNLeakyReLU(VNLinear(x)), single fused MXU call for feat+dir ----
    x = x_ref[...]                                           # (3, M, D)
    pd = mm(x, w1_ref[...])                                  # (3, M, 2D)
    uit = _vn_leaky(pd[..., :D], pd[..., D:], NEG_SLOPE)     # (3, M, D)

    # Per-(b, v) temporal mean — the "context" half of the (never materialized) channel concat.
    uit_mean = jnp.mean(uit.reshape(V, B, L, D), axis=2)     # (3, B, D)

    # vn1 feat/dir + fc2 in one fused matmul per path; mean path added with implicit broadcast
    # in the (V, B, L, C) view (no expand_L slab).
    top = mm(uit, wt_top_ref[...])                           # (3, M, 2D+1)
    bot = mm(uit_mean, wt_bot_ref[...])                      # (3, B, 2D+1)
    cat = (top.reshape(V, B, L, W) + bot[:, :, None, :]).reshape(V, M, W)
    s = cat[..., 2 * D:]                                     # (3, M, 1)  invariant fc2 scalars
    z = _vn_bn_leaky(cat[..., :D], cat[..., D:2 * D],
                     bn1_gamma_ref[...], bn1_beta_ref[...])  # (3, M, D)

    # ---- VNStdFeature.vn2 (D -> D//2), feat|dir fused ----
    pd2 = mm(z, w2_ref[...])                                 # (3, M, D)
    z = _vn_bn_leaky(pd2[..., :D2], pd2[..., D2:],
                     bn2_gamma_ref[...], bn2_beta_ref[...])  # (3, M, D//2)

    # ---- frame R, attention logits (x_std never built), softmax over L, weighted sum ----
    R = mm(z, w_lin_ref[...])                                # (3, M, 3); R[j,:,k] = z0[b,j,k,l]
    ait = jnp.sum(R * s, axis=0)                             # (M, 3);   ait[:,k] = fc2(x_std_k)

    ait = ait.reshape(B, L, V)
    ait = ait - jnp.max(ait, axis=1, keepdims=True)
    e = jnp.exp(ait)
    attn = e * _fast_recip(jnp.sum(e, axis=1, keepdims=True))           # (B, L, 3)

    x_blk = x_ref[...].reshape(V, B, L, D)                   # re-read x (short live range)
    pooled = [jnp.sum(attn[:, :, k:k + 1] * x_blk[k], axis=1) for k in range(V)]  # (B, D)
    out_ref[...] = jnp.stack(pooled, axis=0)                 # single coalesced store (3, B, D)


def vn_inv_attention_with_context(x, params):
    """x: (B, D, 3, L) float32  ->  (B, D, 3), matching the PyTorch module output."""
    B, D, V, L = x.shape
    assert V == 3 and D % 2 == 0
    assert L % 8 == 0, "sequence length must be a multiple of 8 for the stacked row layout"

    x_k = jnp.transpose(x, (2, 0, 3, 1)).reshape(3, B * L, D).astype(jnp.float32)

    # ---- weight packing (all tiny; done once in the wrapper) ----
    w_fc1_t = params["w_fc1_t"]                                    # (D, D)
    w1 = jnp.concatenate([w_fc1_t, w_fc1_t @ params["w_act_dir_t"]], axis=1)        # (D, 2D)
    w_vn1_feat = params["w_vn1_feat_t"]                            # (2D, D)
    w_vn1_dir = params["w_vn1_dir_t"]                              # (2D, D)
    w_fc2 = params["w_fc2_t"]                                      # (2D, 1)
    wt_top = jnp.concatenate([w_vn1_feat[:D], w_vn1_dir[:D], w_fc2[:D]], axis=1)    # (D, 2D+1)
    wt_bot = jnp.concatenate([w_vn1_feat[D:], w_vn1_dir[D:], w_fc2[D:]], axis=1)    # (D, 2D+1)
    w2 = jnp.concatenate([params["w_vn2_feat_t"], params["w_vn2_dir_t"]], axis=1)   # (D, D)
    w_lin = params["w_lin_cols"][:, :, 0].T                        # (D//2, 3)

    args = (
        x_k, w1, wt_top, wt_bot,
        params["bn1_gamma"], params["bn1_beta"],
        w2, params["bn2_gamma"], params["bn2_beta"],
        w_lin,
    )

    # Generation-aware VMEM budget: ~live f32 activation slabs + weights, doubled for compiler
    # temporaries, capped at min(48 MiB, 50% of physical VMEM) so v7x (64 MiB) keeps headroom.
    act_bytes = 4 * 3 * B * L * (12 * D + 16)
    w_bytes = sum(int(a.size) * 4 for a in args[1:])
    vmem_cap = 128 << 20
    try:
        cap = getattr(pltpu.get_tpu_info(), "vmem_capacity_bytes", None)
        if cap:
            vmem_cap = int(cap)
    except Exception:
        pass
    vmem_limit = int(min(max(2 * (act_bytes + w_bytes), 4 << 20),
                         min(48 << 20, vmem_cap // 2)))
    # TODO(synk): for large B*L*D this clamp (and VMEM itself) is insufficient — a gridded
    # two-phase stats/apply variant with dimension_semantics=("parallel", ...) is required.

    M = B * L
    flops = int(
        2 * 3 * M * D * (2 * D)            # fused fc1|dir
        + 2 * 3 * M * D * (2 * D + 1)      # fused vn1 top
        + 2 * 3 * B * D * (2 * D + 1)      # fused vn1 bottom (mean path)
        + 2 * 3 * M * D * D                # fused vn2
        + 2 * 3 * M * (D // 2) * 3         # vn_lin
        + 2 * 3 * B * L * D                # attention pooling
        + 40 * 3 * M * D)                  # elementwise
    transcendentals = int(M * (3 * D + 8) + 3 * B * L)
    bytes_accessed = int(4 * (3 * M * D + 3 * B * D)) + w_bytes

    vmem = pl.BlockSpec(memory_space=pltpu.MemorySpace.VMEM)
    out3 = pl.pallas_call(
        functools.partial(_vn_inv_attn_kernel, B=B, L=L, D=D),
        out_shape=jax.ShapeDtypeStruct((3, B, D), jnp.float32),
        in_specs=[vmem] * len(args),
        out_specs=vmem,
        compiler_params=pltpu.CompilerParams(vmem_limit_bytes=vmem_limit),
        cost_estimate=pl.CostEstimate(flops=flops, transcendentals=transcendentals,
                                      bytes_accessed=bytes_accessed),
    )(*args)
    return jnp.transpose(out3, (1, 2, 0))        # (B, D, 3)


def init_params(key, D):
    """Deterministic init mimicking nn.Linear default scale (uniform +-1/sqrt(fan_in))."""
    D2 = D // 2
    ks = jax.random.split(key, 8)

    def linear_w(k, out_f, in_f):
        bound = 1.0 / (in_f ** 0.5)
        return jax.random.uniform(k, (out_f, in_f), jnp.float32, -bound, bound)

    w_fc1 = linear_w(ks[0], D, D)            # fc1.map_to_feat
    w_act_dir = linear_w(ks[1], D, D)        # activation.map_to_dir
    w_vn1_feat = linear_w(ks[2], D, 2 * D)   # attn_std_feature.vn1.map_to_feat
    w_vn1_dir = linear_w(ks[3], D, 2 * D)    # attn_std_feature.vn1.map_to_dir
    w_vn2_feat = linear_w(ks[4], D2, D)      # attn_std_feature.vn2.map_to_feat
    w_vn2_dir = linear_w(ks[5], D2, D)       # attn_std_feature.vn2.map_to_dir
    w_lin = linear_w(ks[6], 3, D2)           # attn_std_feature.vn_lin
    w_fc2 = linear_w(ks[7], 1, 2 * D)        # fc2.map_to_feat

    return dict(
        w_fc1_t=w_fc1.T, w_act_dir_t=w_act_dir.T,
        w_vn1_feat_t=w_vn1_feat.T, w_vn1_dir_t=w_vn1_dir.T,
        bn1_gamma=jnp.ones((1, D), jnp.float32), bn1_beta=jnp.zeros((1, D), jnp.float32),
        w_vn2_feat_t=w_vn2_feat.T, w_vn2_dir_t=w_vn2_dir.T,
        bn2_gamma=jnp.ones((1, D2), jnp.float32), bn2_beta=jnp.zeros((1, D2), jnp.float32),
        w_lin_cols=w_lin[:, :, None],        # (3, D2, 1)
        w_fc2_t=w_fc2.T,
    )


def reference_forward(x, params):
    """Pure-JAX reference reproducing the PyTorch forward (x: (B, D, 3, L))."""
    hp = jax.lax.Precision.HIGHEST

    def vn_linear(h, wt):                    # wt: (C_in, C_out)
        return jnp.einsum('bivl,io->bovl', h, wt, precision=hp)

    def vn_leaky(p, d, ns):
        dot = jnp.sum(p * d, axis=2, keepdims=True)
        dsq = jnp.sum(d * d, axis=2, keepdims=True)
        neg = p - (dot / (dsq + EPS)) * d
        return ns * p + (1.0 - ns) * jnp.where(dot >= 0, p, neg)

    def vn_bn_train(p, gamma, beta):
        norm = jnp.sqrt(jnp.sum(p * p, axis=2)) + EPS                 # (B, C, L)
        mean = jnp.mean(norm, axis=(0, 2), keepdims=True)
        var = jnp.mean((norm - mean) ** 2, axis=(0, 2), keepdims=True)
        nbn = (norm - mean) / jnp.sqrt(var + BN_EPS)
        nbn = nbn * gamma.reshape(1, -1, 1) + beta.reshape(1, -1, 1)
        return p / norm[:, :, None, :] * nbn[:, :, None, :]

    p1 = vn_linear(x, params['w_fc1_t'])
    d1 = vn_linear(p1, params['w_act_dir_t'])
    uit = vn_leaky(p1, d1, NEG_SLOPE)
    uit_mean = jnp.broadcast_to(jnp.mean(uit, axis=-1, keepdims=True), uit.shape)
    uitc = jnp.concatenate([uit, uit_mean], axis=1)

    def vn_lin_leaky_bn(h, wf, wd, g, bt):
        p = vn_bn_train(vn_linear(h, wf), g, bt)
        d = vn_linear(h, wd)
        return vn_leaky(p, d, NEG_SLOPE)

    z = vn_lin_leaky_bn(uitc, params['w_vn1_feat_t'], params['w_vn1_dir_t'],
                        params['bn1_gamma'], params['bn1_beta'])
    z = vn_lin_leaky_bn(z, params['w_vn2_feat_t'], params['w_vn2_dir_t'],
                        params['bn2_gamma'], params['bn2_beta'])
    w_lin = params['w_lin_cols'][:, :, 0]                             # (3, D//2)
    z0 = jnp.einsum('bcvl,kc->bkvl', z, w_lin, precision=hp)
    z0 = jnp.transpose(z0, (0, 2, 1, 3))
    x_std = jnp.einsum('bijl,bjkl->bikl', uitc, z0, precision=hp)
    ait = jnp.einsum('bivl,io->bovl', x_std, params['w_fc2_t'], precision=hp)
    attn = jax.nn.softmax(ait, axis=3)
    out = jnp.einsum('bsvl,bdvl->bsdv', attn, x, precision=hp)
    return out[:, 0]                                                  # (B, D, 3)


if __name__ == "__main__":
    B, D, L = 2, 8, 16           # hidden_dim = D = nb_units // 3 ; D must be even
    key = jax.random.PRNGKey(0)
    kx, kp = jax.random.split(key)
    x = jax.random.normal(kx, (B, D, 3, L), jnp.float32)
    params = init_params(kp, D)

    out = vn_inv_attention_with_context(x, params)
    out = jax.block_until_ready(out)
    assert out.shape == (B, D, 3)

    ref = reference_forward(x, params)
    max_err = float(jnp.max(jnp.abs(out - ref)))
    if not bool(jnp.allclose(out, ref, rtol=1e-3, atol=1e-3)):
        raise AssertionError(f"kernel/reference mismatch, max abs err = {max_err}")
    print("KERNEL_OK")
</pallas_src>

<mosaic_0001>
module attributes {stable_mosaic.version = 11 : i64} {
  func.func @_vn_inv_attn_kernel(%arg0: memref<3x32x8xf32, #tpu.memory_space<vmem>>, %arg1: memref<8x16xf32, #tpu.memory_space<vmem>>, %arg2: memref<8x17xf32, #tpu.memory_space<vmem>>, %arg3: memref<8x17xf32, #tpu.memory_space<vmem>>, %arg4: memref<1x8xf32, #tpu.memory_space<vmem>>, %arg5: memref<1x8xf32, #tpu.memory_space<vmem>>, %arg6: memref<8x8xf32, #tpu.memory_space<vmem>>, %arg7: memref<1x4xf32, #tpu.memory_space<vmem>>, %arg8: memref<1x4xf32, #tpu.memory_space<vmem>>, %arg9: memref<4x3xf32, #tpu.memory_space<vmem>>, %arg10: memref<3x2x8xf32, #tpu.memory_space<vmem>>) attributes {dimension_semantics = [], scalar_prefetch = 0 : i64, scratch_operands = 0 : i64, tpu.core_type = #tpu.core_type<tc>} {
    %c0 = arith.constant 0 : index
    %c0_0 = arith.constant 0 : index
    %c0_1 = arith.constant 0 : index
    %0 = vector.load %arg0[%c0, %c0_0, %c0_1] : memref<3x32x8xf32, #tpu.memory_space<vmem>>, vector<3x32x8xf32>
    %c0_2 = arith.constant 0 : index
    %c0_3 = arith.constant 0 : index
    %1 = vector.load %arg1[%c0_2, %c0_3] : memref<8x16xf32, #tpu.memory_space<vmem>>, vector<8x16xf32>
    %2 = vector.shape_cast %0 : vector<3x32x8xf32> to vector<96x8xf32>
    %cst = arith.constant dense<0.000000e+00> : vector<96x16xf32>
    %3 = tpu.matmul %2, %1, %cst {dimension_numbers = #tpu.dot_dimension_numbers<[1], [0], [0], [1], [0, 0, 1, 1], [], []>} : vector<96x8xf32>, vector<8x16xf32>, vector<96x16xf32> -> vector<96x16xf32>
    %4 = vector.shape_cast %3 : vector<96x16xf32> to vector<3x32x16xf32>
    %5 = vector.extract_strided_slice %4 {offsets = [0, 0, 0], sizes = [3, 32, 8], strides = [1, 1, 1]} : vector<3x32x16xf32> to vector<3x32x8xf32>
    %6 = vector.extract_strided_slice %4 {offsets = [0, 0, 8], sizes = [3, 32, 8], strides = [1, 1, 1]} : vector<3x32x16xf32> to vector<3x32x8xf32>
    %7 = arith.mulf %5, %6 : vector<3x32x8xf32>
    %cst_4 = arith.constant dense<0.000000e+00> : vector<32x8xf32>
    %8 = vector.multi_reduction <add>, %7, %cst_4 [0] : vector<3x32x8xf32> to vector<32x8xf32>
    %9 = vector.shape_cast %8 : vector<32x8xf32> to vector<1x32x8xf32>
    %10 = arith.mulf %6, %6 : vector<3x32x8xf32>
    %cst_5 = arith.constant dense<0.000000e+00> : vector<32x8xf32>
    %11 = vector.multi_reduction <add>, %10, %cst_5 [0] : vector<3x32x8xf32> to vector<32x8xf32>
    %12 = vector.shape_cast %11 : vector<32x8xf32> to vector<1x32x8xf32>
    %cst_6 = arith.constant 9.99999997E-7 : f32
    %13 = vector.broadcast %cst_6 : f32 to vector<1x32x8xf32>
    %14 = arith.addf %12, %13 : vector<1x32x8xf32>
    %15 = tpu.reciprocal %14 {approx = true} : vector<1x32x8xf32> -> vector<1x32x8xf32>
    %16 = arith.mulf %14, %15 : vector<1x32x8xf32>
    %cst_7 = arith.constant 2.000000e+00 : f32
    %17 = vector.broadcast %cst_7 : f32 to vector<1x32x8xf32>
    %18 = arith.subf %17, %16 : vector<1x32x8xf32>
    %19 = arith.mulf %15, %18 : vector<1x32x8xf32>
    %20 = arith.mulf %9, %19 : vector<1x32x8xf32>
    %cst_8 = arith.constant 0.000000e+00 : f32
    %21 = vector.broadcast %cst_8 : f32 to vector<1x32x8xf32>
    %22 = arith.cmpf olt, %9, %21 : vector<1x32x8xf32>
    %cst_9 = arith.constant 0.000000e+00 : f32
    %23 = vector.broadcast %cst_9 : f32 to vector<1x32x8xf32>
    %24 = arith.select %22, %20, %23 : vector<1x32x8xi1>, vector<1x32x8xf32>
    %cst_10 = arith.constant 8.000000e-01 : f32
    %25 = vector.broadcast %cst_10 : f32 to vector<1x32x8xf32>
    %26 = arith.mulf %25, %24 : vector<1x32x8xf32>
    %27 = vector.broadcast %26 : vector<1x32x8xf32> to vector<3x32x8xf32>
    %28 = arith.mulf %27, %6 : vector<3x32x8xf32>
    %29 = arith.subf %5, %28 : vector<3x32x8xf32>
    %30 = vector.shape_cast %29 : vector<3x32x8xf32> to vector<3x2x16x8xf32>
    %cst_11 = arith.constant dense<0.000000e+00> : vector<3x2x8xf32>
    %31 = vector.multi_reduction <add>, %30, %cst_11 [2] : vector<3x2x16x8xf32> to vector<3x2x8xf32>
    %cst_12 = arith.constant 1.600000e+01 : f32
    %32 = vector.broadcast %cst_12 : f32 to vector<3x2x8xf32>
    %33 = arith.divf %31, %32 : vector<3x2x8xf32>
    %c0_13 = arith.constant 0 : index
    %c0_14 = arith.constant 0 : index
    %34 = vector.load %arg2[%c0_13, %c0_14] : memref<8x17xf32, #tpu.memory_space<vmem>>, vector<8x17xf32>
    %35 = vector.shape_cast %29 : vector<3x32x8xf32> to vector<96x8xf32>
    %cst_15 = arith.constant dense<0.000000e+00> : vector<96x17xf32>
    %36 = tpu.matmul %35, %34, %cst_15 {dimension_numbers = #tpu.dot_dimension_numbers<[1], [0], [0], [1], [0, 0, 1, 1], [], []>} : vector<96x8xf32>, vector<8x17xf32>, vector<96x17xf32> -> vector<96x17xf32>
    %37 = vector.shape_cast %36 : vector<96x17xf32> to vector<3x32x17xf32>
    %c0_16 = arith.constant 0 : index
    %c0_17 = arith.constant 0 : index
    %38 = vector.load %arg3[%c0_16, %c0_17] : memref<8x17xf32, #tpu.memory_space<vmem>>, vector<8x17xf32>
    %39 = vector.shape_cast %33 : vector<3x2x8xf32> to vector<6x8xf32>
    %cst_18 = arith.constant dense<0.000000e+00> : vector<6x17xf32>
    %40 = tpu.matmul %39, %38, %cst_18 {dimension_numbers = #tpu.dot_dimension_numbers<[1], [0], [0], [1], [0, 0, 1, 1], [], []>} : vector<6x8xf32>, vector<8x17xf32>, vector<6x17xf32> -> vector<6x17xf32>
    %41 = vector.shape_cast %40 : vector<6x17xf32> to vector<3x2x17xf32>
    %42 = vector.shape_cast %37 : vector<3x32x17xf32> to vector<3x2x16x17xf32>
    %43 = vector.shape_cast %41 : vector<3x2x17xf32> to vector<3x2x1x17xf32>
    %44 = vector.broadcast %43 : vector<3x2x1x17xf32> to vector<3x2x16x17xf32>
    %45 = arith.addf %42, %44 : vector<3x2x16x17xf32>
    %46 = vector.shape_cast %45 : vector<3x2x16x17xf32> to vector<3x32x17xf32>
    %47 = vector.extract_strided_slice %46 {offsets = [0, 0, 16], sizes = [3, 32, 1], strides = [1, 1, 1]} : vector<3x32x17xf32> to vector<3x32x1xf32>
    %48 = vector.extract_strided_slice %46 {offsets = [0, 0, 0], sizes = [3, 32, 8], strides = [1, 1, 1]} : vector<3x32x17xf32> to vector<3x32x8xf32>
    %49 = vector.extract_strided_slice %46 {offsets = [0, 0, 8], sizes = [3, 32, 8], strides = [1, 1, 1]} : vector<3x32x17xf32> to vector<3x32x8xf32>
    %c0_19 = arith.constant 0 : index
    %c0_20 = arith.constant 0 : index
    %50 = vector.load %arg4[%c0_19, %c0_20] : memref<1x8xf32, #tpu.memory_space<vmem>>, vector<1x8xf32>
    %c0_21 = arith.constant 0 : index
    %c0_22 = arith.constant 0 : index
    %51 = vector.load %arg5[%c0_21, %c0_22] : memref<1x8xf32, #tpu.memory_space<vmem>>, vector<1x8xf32>
    %52 = arith.mulf %48, %48 : vector<3x32x8xf32>
    %cst_23 = arith.constant dense<0.000000e+00> : vector<32x8xf32>
    %53 = vector.multi_reduction <add>, %52, %cst_23 [0] : vector<3x32x8xf32> to vector<32x8xf32>
    %54 = math.sqrt %53 : vector<32x8xf32>
    %cst_24 = arith.constant 9.99999997E-7 : f32
    %55 = vector.broadcast %cst_24 : f32 to vector<32x8xf32>
    %56 = arith.addf %54, %55 : vector<32x8xf32>
    %cst_25 = arith.constant dense<0.000000e+00> : vector<8xf32>
    %57 = vector.multi_reduction <add>, %56, %cst_25 [0] : vector<32x8xf32> to vector<8xf32>
    %58 = vector.shape_cast %57 : vector<8xf32> to vector<1x8xf32>
    %cst_26 = arith.constant 3.200000e+01 : f32
    %59 = vector.broadcast %cst_26 : f32 to vector<1x8xf32>
    %60 = arith.divf %58, %59 : vector<1x8xf32>
    %61 = vector.broadcast %60 : vector<1x8xf32> to vector<32x8xf32>
    %62 = arith.subf %56, %61 : vector<32x8xf32>
    %63 = arith.mulf %62, %62 : vector<32x8xf32>
    %cst_27 = arith.constant dense<0.000000e+00> : vector<8xf32>
    %64 = vector.multi_reduction <add>, %63, %cst_27 [0] : vector<32x8xf32> to vector<8xf32>
    %65 = vector.shape_cast %64 : vector<8xf32> to vector<1x8xf32>
    %cst_28 = arith.constant 3.200000e+01 : f32
    %66 = vector.broadcast %cst_28 : f32 to vector<1x8xf32>
    %67 = arith.divf %65, %66 : vector<1x8xf32>
    %cst_29 = arith.constant 9.99999974E-6 : f32
    %68 = vector.broadcast %cst_29 : f32 to vector<1x8xf32>
    %69 = arith.addf %67, %68 : vector<1x8xf32>
    %70 = math.rsqrt %69 : vector<1x8xf32>
    %71 = vector.broadcast %60 : vector<1x8xf32> to vector<32x8xf32>
    %72 = arith.subf %56, %71 : vector<32x8xf32>
    %73 = vector.broadcast %70 : vector<1x8xf32> to vector<32x8xf32>
    %74 = arith.mulf %72, %73 : vector<32x8xf32>
    %75 = vector.broadcast %50 : vector<1x8xf32> to vector<32x8xf32>
    %76 = arith.mulf %74, %75 : vector<32x8xf32>
    %77 = vector.broadcast %51 : vector<1x8xf32> to vector<32x8xf32>
    %78 = arith.addf %76, %77 : vector<32x8xf32>
    %79 = tpu.reciprocal %56 {approx = true} : vector<32x8xf32> -> vector<32x8xf32>
    %80 = arith.mulf %56, %79 : vector<32x8xf32>
    %cst_30 = arith.constant 2.000000e+00 : f32
    %81 = vector.broadcast %cst_30 : f32 to vector<32x8xf32>
    %82 = arith.subf %81, %80 : vector<32x8xf32>
    %83 = arith.mulf %79, %82 : vector<32x8xf32>
    %84 = arith.mulf %78, %83 : vector<32x8xf32>
    %85 = vector.shape_cast %84 : vector<32x8xf32> to vector<1x32x8xf32>
    %86 = vector.broadcast %85 : vector<1x32x8xf32> to vector<3x32x8xf32>
    %87 = arith.mulf %48, %86 : vector<3x32x8xf32>
    %88 = arith.mulf %87, %49 : vector<3x32x8xf32>
    %cst_31 = arith.constant dense<0.000000e+00> : vector<32x8xf32>
    %89 = vector.multi_reduction <add>, %88, %cst_31 [0] : vector<3x32x8xf32> to vector<32x8xf32>
    %90 = vector.shape_cast %89 : vector<32x8xf32> to vector<1x32x8xf32>
    %91 = arith.mulf %49, %49 : vector<3x32x8xf32>
    %cst_32 = arith.constant dense<0.000000e+00> : vector<32x8xf32>
    %92 = vector.multi_reduction <add>, %91, %cst_32 [0] : vector<3x32x8xf32> to vector<32x8xf32>
    %93 = vector.shape_cast %92 : vector<32x8xf32> to vector<1x32x8xf32>
    %cst_33 = arith.constant 9.99999997E-7 : f32
    %94 = vector.broadcast %cst_33 : f32 to vector<1x32x8xf32>
    %95 = arith.addf %93, %94 : vector<1x32x8xf32>
    %96 = tpu.reciprocal %95 {approx = true} : vector<1x32x8xf32> -> vector<1x32x8xf32>
    %97 = arith.mulf %95, %96 : vector<1x32x8xf32>
    %cst_34 = arith.constant 2.000000e+00 : f32
    %98 = vector.broadcast %cst_34 : f32 to vector<1x32x8xf32>
    %99 = arith.subf %98, %97 : vector<1x32x8xf32>
    %100 = arith.mulf %96, %99 : vector<1x32x8xf32>
    %101 = arith.mulf %90, %100 : vector<1x32x8xf32>
    %cst_35 = arith.constant 0.000000e+00 : f32
    %102 = vector.broadcast %cst_35 : f32 to vector<1x32x8xf32>
    %103 = arith.cmpf olt, %90, %102 : vector<1x32x8xf32>
    %cst_36 = arith.constant 0.000000e+00 : f32
    %104 = vector.broadcast %cst_36 : f32 to vector<1x32x8xf32>
    %105 = arith.select %103, %101, %104 : vector<1x32x8xi1>, vector<1x32x8xf32>
    %cst_37 = arith.constant 8.000000e-01 : f32
    %106 = vector.broadcast %cst_37 : f32 to vector<1x32x8xf32>
    %107 = arith.mulf %106, %105 : vector<1x32x8xf32>
    %108 = vector.broadcast %107 : vector<1x32x8xf32> to vector<3x32x8xf32>
    %109 = arith.mulf %108, %49 : vector<3x32x8xf32>
    %110 = arith.subf %87, %109 : vector<3x32x8xf32>
    %c0_38 = arith.constant 0 : index
    %c0_39 = arith.constant 0 : index
    %111 = vector.load %arg6[%c0_38, %c0_39] : memref<8x8xf32, #tpu.memory_space<vmem>>, vector<8x8xf32>
    %112 = vector.shape_cast %110 : vector<3x32x8xf32> to vector<96x8xf32>
    %cst_40 = arith.constant dense<0.000000e+00> : vector<96x8xf32>
    %113 = tpu.matmul %112, %111, %cst_40 {dimension_numbers = #tpu.dot_dimension_numbers<[1], [0], [0], [1], [0, 0, 1, 1], [], []>} : vector<96x8xf32>, vector<8x8xf32>, vector<96x8xf32> -> vector<96x8xf32>
    %114 = vector.shape_cast %113 : vector<96x8xf32> to vector<3x32x8xf32>
    %115 = vector.extract_strided_slice %114 {offsets = [0, 0, 0], sizes = [3, 32, 4], strides = [1, 1, 1]} : vector<3x32x8xf32> to vector<3x32x4xf32>
    %116 = vector.extract_strided_slice %114 {offsets = [0, 0, 4], sizes = [3, 32, 4], strides = [1, 1, 1]} : vector<3x32x8xf32> to vector<3x32x4xf32>
    %c0_41 = arith.constant 0 : index
    %c0_42 = arith.constant 0 : index
    %117 = vector.load %arg7[%c0_41, %c0_42] : memref<1x4xf32, #tpu.memory_space<vmem>>, vector<1x4xf32>
    %c0_43 = arith.constant 0 : index
    %c0_44 = arith.constant 0 : index
    %118 = vector.load %arg8[%c0_43, %c0_44] : memref<1x4xf32, #tpu.memory_space<vmem>>, vector<1x4xf32>
    %119 = arith.mulf %115, %115 : vector<3x32x4xf32>
    %cst_45 = arith.constant dense<0.000000e+00> : vector<32x4xf32>
    %120 = vector.multi_reduction <add>, %119, %cst_45 [0] : vector<3x32x4xf32> to vector<32x4xf32>
    %121 = math.sqrt %120 : vector<32x4xf32>
    %cst_46 = arith.constant 9.99999997E-7 : f32
    %122 = vector.broadcast %cst_46 : f32 to vector<32x4xf32>
    %123 = arith.addf %121, %122 : vector<32x4xf32>
    %cst_47 = arith.constant dense<0.000000e+00> : vector<4xf32>
    %124 = vector.multi_reduction <add>, %123, %cst_47 [0] : vector<32x4xf32> to vector<4xf32>
    %125 = vector.shape_cast %124 : vector<4xf32> to vector<1x4xf32>
    %cst_48 = arith.constant 3.200000e+01 : f32
    %126 = vector.broadcast %cst_48 : f32 to vector<1x4xf32>
    %127 = arith.divf %125, %126 : vector<1x4xf32>
    %128 = vector.broadcast %127 : vector<1x4xf32> to vector<32x4xf32>
    %129 = arith.subf %123, %128 : vector<32x4xf32>
    %130 = arith.mulf %129, %129 : vector<32x4xf32>
    %cst_49 = arith.constant dense<0.000000e+00> : vector<4xf32>
    %131 = vector.multi_reduction <add>, %130, %cst_49 [0] : vector<32x4xf32> to vector<4xf32>
    %132 = vector.shape_cast %131 : vector<4xf32> to vector<1x4xf32>
    %cst_50 = arith.constant 3.200000e+01 : f32
    %133 = vector.broadcast %cst_50 : f32 to vector<1x4xf32>
    %134 = arith.divf %132, %133 : vector<1x4xf32>
    %cst_51 = arith.constant 9.99999974E-6 : f32
    %135 = vector.broadcast %cst_51 : f32 to vector<1x4xf32>
    %136 = arith.addf %134, %135 : vector<1x4xf32>
    %137 = math.rsqrt %136 : vector<1x4xf32>
    %138 = vector.broadcast %127 : vector<1x4xf32> to vector<32x4xf32>
    %139 = arith.subf %123, %138 : vector<32x4xf32>
    %140 = vector.broadcast %137 : vector<1x4xf32> to vector<32x4xf32>
    %141 = arith.mulf %139, %140 : vector<32x4xf32>
    %142 = vector.broadcast %117 : vector<1x4xf32> to vector<32x4xf32>
    %143 = arith.mulf %141, %142 : vector<32x4xf32>
    %144 = vector.broadcast %118 : vector<1x4xf32> to vector<32x4xf32>
    %145 = arith.addf %143, %144 : vector<32x4xf32>
    %146 = tpu.reciprocal %123 {approx = true} : vector<32x4xf32> -> vector<32x4xf32>
    %147 = arith.mulf %123, %146 : vector<32x4xf32>
    %cst_52 = arith.constant 2.000000e+00 : f32
    %148 = vector.broadcast %cst_52 : f32 to vector<32x4xf32>
    %149 = arith.subf %148, %147 : vector<32x4xf32>
    %150 = arith.mulf %146, %149 : vector<32x4xf32>
    %151 = arith.mulf %145, %150 : vector<32x4xf32>
    %152 = vector.shape_cast %151 : vector<32x4xf32> to vector<1x32x4xf32>
    %153 = vector.broadcast %152 : vector<1x32x4xf32> to vector<3x32x4xf32>
    %154 = arith.mulf %115, %153 : vector<3x32x4xf32>
    %155 = arith.mulf %154, %116 : vector<3x32x4xf32>
    %cst_53 = arith.constant dense<0.000000e+00> : vector<32x4xf32>
    %156 = vector.multi_reduction <add>, %155, %cst_53 [0] : vector<3x32x4xf32> to vector<32x4xf32>
    %157 = vector.shape_cast %156 : vector<32x4xf32> to vector<1x32x4xf32>
    %158 = arith.mulf %116, %116 : vector<3x32x4xf32>
    %cst_54 = arith.constant dense<0.000000e+00> : vector<32x4xf32>
    %159 = vector.multi_reduction <add>, %158, %cst_54 [0] : vector<3x32x4xf32> to vector<32x4xf32>
    %160 = vector.shape_cast %159 : vector<32x4xf32> to vector<1x32x4xf32>
    %cst_55 = arith.constant 9.99999997E-7 : f32
    %161 = vector.broadcast %cst_55 : f32 to vector<1x32x4xf32>
    %162 = arith.addf %160, %161 : vector<1x32x4xf32>
    %163 = tpu.reciprocal %162 {approx = true} : vector<1x32x4xf32> -> vector<1x32x4xf32>
    %164 = arith.mulf %162, %163 : vector<1x32x4xf32>
    %cst_56 = arith.constant 2.000000e+00 : f32
    %165 = vector.broadcast %cst_56 : f32 to vector<1x32x4xf32>
    %166 = arith.subf %165, %164 : vector<1x32x4xf32>
    %167 = arith.mulf %163, %166 : vector<1x32x4xf32>
    %168 = arith.mulf %157, %167 : vector<1x32x4xf32>
    %cst_57 = arith.constant 0.000000e+00 : f32
    %169 = vector.broadcast %cst_57 : f32 to vector<1x32x4xf32>
    %170 = arith.cmpf olt, %157, %169 : vector<1x32x4xf32>
    %cst_58 = arith.constant 0.000000e+00 : f32
    %171 = vector.broadcast %cst_58 : f32 to vector<1x32x4xf32>
    %172 = arith.select %170, %168, %171 : vector<1x32x4xi1>, vector<1x32x4xf32>
    %cst_59 = arith.constant 8.000000e-01 : f32
    %173 = vector.broadcast %cst_59 : f32 to vector<1x32x4xf32>
    %174 = arith.mulf %173, %172 : vector<1x32x4xf32>
    %175 = vector.broadcast %174 : vector<1x32x4xf32> to vector<3x32x4xf32>
    %176 = arith.mulf %175, %116 : vector<3x32x4xf32>
    %177 = arith.subf %154, %176 : vector<3x32x4xf32>
    %c0_60 = arith.constant 0 : index
    %c0_61 = arith.constant 0 : index
    %178 = vector.load %arg9[%c0_60, %c0_61] : memref<4x3xf32, #tpu.memory_space<vmem>>, vector<4x3xf32>
    %179 = vector.shape_cast %177 : vector<3x32x4xf32> to vector<96x4xf32>
    %cst_62 = arith.constant dense<0.000000e+00> : vector<96x3xf32>
    %180 = tpu.matmul %179, %178, %cst_62 {dimension_numbers = #tpu.dot_dimension_numbers<[1], [0], [0], [1], [0, 0, 1, 1], [], []>} : vector<96x4xf32>, vector<4x3xf32>, vector<96x3xf32> -> vector<96x3xf32>
    %181 = vector.shape_cast %180 : vector<96x3xf32> to vector<3x32x3xf32>
    %182 = vector.broadcast %47 : vector<3x32x1xf32> to vector<3x32x3xf32>
    %183 = arith.mulf %181, %182 : vector<3x32x3xf32>
    %cst_63 = arith.constant dense<0.000000e+00> : vector<32x3xf32>
    %184 = vector.multi_reduction <add>, %183, %cst_63 [0] : vector<3x32x3xf32> to vector<32x3xf32>
    %185 = vector.shape_cast %184 : vector<32x3xf32> to vector<2x16x3xf32>
    %cst_64 = arith.constant dense<0xFF800000> : vector<2x3xf32>
    %186 = vector.multi_reduction <maximumf>, %185, %cst_64 [1] : vector<2x16x3xf32> to vector<2x3xf32>
    %187 = vector.shape_cast %186 : vector<2x3xf32> to vector<2x1x3xf32>
    %188 = vector.broadcast %187 : vector<2x1x3xf32> to vector<2x16x3xf32>
    %189 = arith.subf %185, %188 : vector<2x16x3xf32>
    %190 = math.exp %189 : vector<2x16x3xf32>
    %cst_65 = arith.constant dense<0.000000e+00> : vector<2x3xf32>
    %191 = vector.multi_reduction <add>, %190, %cst_65 [1] : vector<2x16x3xf32> to vector<2x3xf32>
    %192 = vector.shape_cast %191 : vector<2x3xf32> to vector<2x1x3xf32>
    %193 = tpu.reciprocal %192 {approx = true} : vector<2x1x3xf32> -> vector<2x1x3xf32>
    %194 = arith.mulf %192, %193 : vector<2x1x3xf32>
    %cst_66 = arith.constant 2.000000e+00 : f32
    %195 = vector.broadcast %cst_66 : f32 to vector<2x1x3xf32>
    %196 = arith.subf %195, %194 : vector<2x1x3xf32>
    %197 = arith.mulf %193, %196 : vector<2x1x3xf32>
    %198 = vector.broadcast %197 : vector<2x1x3xf32> to vector<2x16x3xf32>
    %199 = arith.mulf %190, %198 : vector<2x16x3xf32>
    %c0_67 = arith.constant 0 : index
    %c0_68 = arith.constant 0 : index
    %c0_69 = arith.constant 0 : index
    %200 = vector.load %arg0[%c0_67, %c0_68, %c0_69] : memref<3x32x8xf32, #tpu.memory_space<vmem>>, vector<3x32x8xf32>
    %201 = vector.shape_cast %200 : vector<3x32x8xf32> to vector<3x2x16x8xf32>
    %202 = vector.extract_strided_slice %199 {offsets = [0, 0, 0], sizes = [2, 16, 1], strides = [1, 1, 1]} : vector<2x16x3xf32> to vector<2x16x1xf32>
    %203 = vector.extract_strided_slice %201 {offsets = [0, 0, 0, 0], sizes = [1, 2, 16, 8], strides = [1, 1, 1, 1]} : vector<3x2x16x8xf32> to vector<1x2x16x8xf32>
    %204 = vector.shape_cast %203 : vector<1x2x16x8xf32> to vector<2x16x8xf32>
    %205 = vector.broadcast %202 : vector<2x16x1xf32> to vector<2x16x8xf32>
    %206 = arith.mulf %205, %204 : vector<2x16x8xf32>
    %cst_70 = arith.constant dense<0.000000e+00> : vector<2x8xf32>
    %207 = vector.multi_reduction <add>, %206, %cst_70 [1] : vector<2x16x8xf32> to vector<2x8xf32>
    %208 = vector.extract_strided_slice %199 {offsets = [0, 0, 1], sizes = [2, 16, 1], strides = [1, 1, 1]} : vector<2x16x3xf32> to vector<2x16x1xf32>
    %209 = vector.extract_strided_slice %201 {offsets = [1, 0, 0, 0], sizes = [1, 2, 16, 8], strides = [1, 1, 1, 1]} : vector<3x2x16x8xf32> to vector<1x2x16x8xf32>
    %210 = vector.shape_cast %209 : vector<1x2x16x8xf32> to vector<2x16x8xf32>
    %211 = vector.broadcast %208 : vector<2x16x1xf32> to vector<2x16x8xf32>
    %212 = arith.mulf %211, %210 : vector<2x16x8xf32>
    %cst_71 = arith.constant dense<0.000000e+00> : vector<2x8xf32>
    %213 = vector.multi_reduction <add>, %212, %cst_71 [1] : vector<2x16x8xf32> to vector<2x8xf32>
    %214 = vector.extract_strided_slice %199 {offsets = [0, 0, 2], sizes = [2, 16, 1], strides = [1, 1, 1]} : vector<2x16x3xf32> to vector<2x16x1xf32>
    %215 = vector.extract_strided_slice %201 {offsets = [2, 0, 0, 0], sizes = [1, 2, 16, 8], strides = [1, 1, 1, 1]} : vector<3x2x16x8xf32> to vector<1x2x16x8xf32>
    %216 = vector.shape_cast %215 : vector<1x2x16x8xf32> to vector<2x16x8xf32>
    %217 = vector.broadcast %214 : vector<2x16x1xf32> to vector<2x16x8xf32>
    %218 = arith.mulf %217, %216 : vector<2x16x8xf32>
    %cst_72 = arith.constant dense<0.000000e+00> : vector<2x8xf32>
    %219 = vector.multi_reduction <add>, %218, %cst_72 [1] : vector<2x16x8xf32> to vector<2x8xf32>
    %220 = vector.shape_cast %207 : vector<2x8xf32> to vector<1x2x8xf32>
    %221 = vector.shape_cast %213 : vector<2x8xf32> to vector<1x2x8xf32>
    %222 = vector.shape_cast %219 : vector<2x8xf32> to vector<1x2x8xf32>
    %223 = tpu.concatenate %220, %221, %222 in 0 : vector<1x2x8xf32>, vector<1x2x8xf32>, vector<1x2x8xf32> -> vector<3x2x8xf32>
    %c0_73 = arith.constant 0 : index
    %c0_74 = arith.constant 0 : index
    %c0_75 = arith.constant 0 : index
    %224 = vector.load %arg10[%c0_73, %c0_74, %c0_75] : memref<3x2x8xf32, #tpu.memory_space<vmem>>, vector<3x2x8xf32>
    tpu.vector_store %arg10[%c0_73, %c0_74, %c0_75], %223 {strides = array<i32>} : memref<3x2x8xf32, #tpu.memory_space<vmem>>, vector<3x2x8xf32>,
    return
  }
}

</mosaic_0001>

<llo_original>
// kernel: tpu_custom_call.1
$region0: #{tpu_custom_call.1}
  #allocation0 [shape = 'u32[]', space=smem, size = 0x4, offset = 0x4, fixed_abs, tag = 'smem constant byte address 0x4 - core index']
  #allocation1 [shape = 'u32[144,128]{1,0:T(1,128)}', space=vmem, size = 0x12000, scoped, tag = 'internal scratch']
  %s0 = inlined_call_operand.vmem [shape: f32[3,32,8], index: 0, kind: input, shape index: {}]
  %s1 = inlined_call_operand.vmem [shape: f32[8,16], index: 1, kind: input, shape index: {}]
  %s2 = inlined_call_operand.vmem [shape: f32[8,17], index: 2, kind: input, shape index: {}]
  %s3 = inlined_call_operand.vmem [shape: f32[8,17], index: 3, kind: input, shape index: {}]
  %s4 = inlined_call_operand.vmem [shape: f32[1,8], index: 4, kind: input, shape index: {}]
  %s5 = inlined_call_operand.vmem [shape: f32[1,8], index: 5, kind: input, shape index: {}]
  %s6 = inlined_call_operand.vmem [shape: f32[8,8], index: 6, kind: input, shape index: {}]
  %s7 = inlined_call_operand.vmem [shape: f32[1,4], index: 7, kind: input, shape index: {}]
  %s8 = inlined_call_operand.vmem [shape: f32[1,4], index: 8, kind: input, shape index: {}]
  %s9 = inlined_call_operand.vmem [shape: f32[4,3], index: 9, kind: input, shape index: {}]
  %s10 = inlined_call_operand.hbm [shape: f32[3,2,8], index: 10, kind: output, shape index: {}]
  %s11 = sld [smem:[#allocation0]]
  $region50: #{tpu_custom_call.1} parent=0
    _
  %s13 = ssub.s32 1, %s11
  %s14 = scalar_select 0, %s13, %s11
  $region1: #{tpu_custom_call.1} parent=0
    #allocation2 [shape = 'u8[3072]{0}', space=vmem, size = 0xc00, scoped, tag = 'output window, operand 0, single buffered']
    #allocation3 [shape = 's32[1]{0}', space=sflag, size = 0x4, scoped, tag = 'scoped memory for tpu_custom_call.1']
    %15 = vsyncpa [#allocation3], 0
    // Predicated region
    $region2: #{tpu_custom_call.1} parent=1 // pred_check
      _
    $region3: #{tpu_custom_call.1} parent=1 // pred_check_branch
      %17 = sbr.rel (0) target = $region5
    $region4: #{tpu_custom_call.1} parent=1 // pred_region
      _
    $region5: #{tpu_custom_call.1} parent=1 // pred_fallthru
      _
    // Predicated region
    $region6: #{tpu_custom_call.1} parent=1 // pred_check
      _
    $region7: #{tpu_custom_call.1} parent=1 // pred_check_branch
      %19 = sbr.rel (0) target = $region9
    $region8: #{tpu_custom_call.1} parent=1 // pred_region
      _
    $region9: #{tpu_custom_call.1} parent=1 // pred_fallthru
      _
    // Predicated region
    $region10: #{tpu_custom_call.1} parent=1 // pred_check
      _
    $region11: #{tpu_custom_call.1} parent=1 // pred_check_branch
      %21 = sbr.rel (0) target = $region13
    $region12: #{tpu_custom_call.1} parent=1 // pred_region
      _
    $region13: #{tpu_custom_call.1} parent=1 // pred_fallthru
      _
    // Predicated region
    $region14: #{tpu_custom_call.1} parent=1 // pred_check
      _
    $region15: #{tpu_custom_call.1} parent=1 // pred_check_branch
      %23 = sbr.rel (0) target = $region17
    $region16: #{tpu_custom_call.1} parent=1 // pred_region
      _
    $region17: #{tpu_custom_call.1} parent=1 // pred_fallthru
      _
    // Predicated region
    $region18: #{tpu_custom_call.1} parent=1 // pred_check
      _
    $region19: #{tpu_custom_call.1} parent=1 // pred_check_branch
      %25 = sbr.rel (0) target = $region21
    $region20: #{tpu_custom_call.1} parent=1 // pred_region
      _
    $region21: #{tpu_custom_call.1} parent=1 // pred_fallthru
      _
    // Predicated region
    $region22: #{tpu_custom_call.1} parent=1 // pred_check
      _
    $region23: #{tpu_custom_call.1} parent=1 // pred_check_branch
      %27 = sbr.rel (0) target = $region25
    $region24: #{tpu_custom_call.1} parent=1 // pred_region
      _
    $region25: #{tpu_custom_call.1} parent=1 // pred_fallthru
      _
    // Predicated region
    $region26: #{tpu_custom_call.1} parent=1 // pred_check
      _
    $region27: #{tpu_custom_call.1} parent=1 // pred_check_branch
      %29 = sbr.rel (0) target = $region29
    $region28: #{tpu_custom_call.1} parent=1 // pred_region
      _
    $region29: #{tpu_custom_call.1} parent=1 // pred_fallthru
      _
    // Predicated region
    $region30: #{tpu_custom_call.1} parent=1 // pred_check
      _
    $region31: #{tpu_custom_call.1} parent=1 // pred_check_branch
      %31 = sbr.rel (0) target = $region33
    $region32: #{tpu_custom_call.1} parent=1 // pred_region
      _
    $region33: #{tpu_custom_call.1} parent=1 // pred_fallthru
      _
    // Predicated region
    $region34: #{tpu_custom_call.1} parent=1 // pred_check
      _
    $region35: #{tpu_custom_call.1} parent=1 // pred_check_branch
      %33 = sbr.rel (0) target = $region37
    $region36: #{tpu_custom_call.1} parent=1 // pred_region
      _
    $region37: #{tpu_custom_call.1} parent=1 // pred_fallthru
      _
    // Predicated region
    $region38: #{tpu_custom_call.1} parent=1 // pred_check
      _
    $region39: #{tpu_custom_call.1} parent=1 // pred_check_branch
      %35 = sbr.rel (0) target = $region41
    $region40: #{tpu_custom_call.1} parent=1 // pred_region
      _
    $region41: #{tpu_custom_call.1} parent=1 // pred_fallthru
      _
    %v36 = vld [vmem:[%s0] sm:$0xff]
    %v37 = vld [vmem:[%s0 + $0x8] sm:$0xff]
    %v38 = vld [vmem:[%s0 + $0x10] sm:$0xff]
    %v39 = vld [vmem:[%s0 + $0x18] sm:$0xff]
    %v40 = vld [vmem:[%s0 + $0x20] sm:$0xff]
    %v41 = vld [vmem:[%s0 + $0x28] sm:$0xff]
    %v42 = vld [vmem:[%s0 + $0x30] sm:$0xff]
    %v43 = vld [vmem:[%s0 + $0x38] sm:$0xff]
    %v44 = vld [vmem:[%s0 + $0x40] sm:$0xff]
    %v45 = vld [vmem:[%s0 + $0x48] sm:$0xff]
    %v46 = vld [vmem:[%s0 + $0x50] sm:$0xff]
    %v47 = vld [vmem:[%s0 + $0x58] sm:$0xff]
    %v48 = vld [vmem:[%s1] sm:$0xff]
    %vm49 = vcmask 64512
    %v51 = vsel %vm49, %v36, 0
    %v54 = vsel %vm49, %v37, 0
    %v57 = vsel %vm49, %v38, 0
    %v60 = vsel %vm49, %v39, 0
    %v63 = vsel %vm49, %v40, 0
    %v66 = vsel %vm49, %v41, 0
    %v69 = vsel %vm49, %v42, 0
    %v72 = vsel %vm49, %v43, 0
    %v75 = vsel %vm49, %v44, 0
    %v78 = vsel %vm49, %v45, 0
    %v81 = vsel %vm49, %v46, 0
    %v84 = vsel %vm49, %v47, 0
    %86 = vmatprep.subr.mxu0 0.0
    %87 = vmatpush1.msra.mxu0 %v48
    %88 = vmatprep.subr.mxu0 0.0
    %89 = vmatpush1.msra.mxu0 0.0
    %90 = vmatprep.subr.mxu0 0.0
    %91 = vmatpush1.msra.mxu0 0.0
    %92 = vmatprep.subr.mxu0 0.0
    %93 = vmatpush1.msra.mxu0 0.0
    %94 = vmatprep.subr.mxu0 0.0
    %95 = vmatpush1.msra.mxu0 0.0
    %96 = vmatprep.subr.mxu0 0.0
    %97 = vmatpush1.msra.mxu0 0.0
    %98 = vmatprep.subr.mxu0 0.0
    %99 = vmatpush1.msra.mxu0 0.0
    %100 = vmatprep.subr.mxu0 0.0
    %101 = vmatpush1.msra.mxu0 0.0
    %102 = vmatprep.subr.mxu0 0.0
    %103 = vmatpush1.msra.mxu0 0.0
    %104 = vmatprep.subr.mxu0 0.0
    %105 = vmatpush1.msra.mxu0 0.0
    %106 = vmatprep.subr.mxu0 0.0
    %107 = vmatpush1.msra.mxu0 0.0
    %108 = vmatprep.subr.mxu0 0.0
    %109 = vmatpush1.msra.mxu0 0.0
    %110 = vmatprep.subr.mxu0 0.0
    %111 = vmatpush1.msra.mxu0 0.0
    %112 = vmatprep.subr.mxu0 0.0
    %113 = vmatpush1.msra.mxu0 0.0
    %114 = vmatprep.subr.mxu0 0.0
    %115 = vmatpush1.msra.mxu0 0.0
    %116 = vmatprep.subr.mxu0 0.0
    %117 = vmatpush1.msra.mxu0 0.0
    %118 = vmatprep.subr.mxu0 0.0
    %119 = vmatpush1.msra.mxu0 0.0
    %120 = vmatprep.subr.mxu0 0.0
    %121 = vmatpush1.msra.mxu0 0.0
    %122 = vmatprep.subr.mxu0 0.0
    %123 = vmatpush1.msra.mxu0 0.0
    %124 = vmatprep.subr.mxu0 0.0
    %125 = vmatpush1.msra.mxu0 0.0
    %126 = vmatprep.subr.mxu0 0.0
    %127 = vmatpush1.msra.mxu0 0.0
    %128 = vmatprep.subr.mxu0 0.0
    %129 = vmatpush1.msra.mxu0 0.0
    %130 = vmatprep.subr.mxu0 0.0
    %131 = vmatpush1.msra.mxu0 0.0
    %132 = vmatprep.subr.mxu0 0.0
    %133 = vmatpush1.msra.mxu0 0.0
    %134 = vmatprep.subr.mxu0 0.0
    %135 = vmatpush1.msra.mxu0 0.0
    %136 = vmatprep.subr.mxu0 0.0
    %137 = vmatpush1.msra.mxu0 0.0
    %138 = vmatprep.subr.mxu0 0.0
    %139 = vmatpush1.msra.mxu0 0.0
    %140 = vmatprep.subr.mxu0 0.0
    %141 = vmatpush1.msra.mxu0 0.0
    %142 = vmatprep.subr.mxu0 0.0
    %143 = vmatpush1.msra.mxu0 0.0
    %144 = vmatprep.subr.mxu0 0.0
    %145 = vmatpush1.msra.mxu0 0.0
    %146 = vmatprep.subr.mxu0 0.0
    %147 = vmatpush1.msra.mxu0 0.0
    %148 = vmatprep.subr.mxu0 0.0
    %149 = vmatpush1.msra.mxu0 0.0
    %150 = vmatprep.mubr.f32.mxu0 0.0
    %151 = vmatmul.mubr.f32.gmra.mrb[0].mxu0 %v51
    %v152 = vpop.f32.mrb[0].mxu0
    %v153 = vadd.f32 0.0, %v152
    %v154 = vpop.f32.mrb[0].mxu0
    %155 = vmatprep.mubr.f32.mxu0 0.0
    %156 = vmatmul.mubr.f32.gmra.mrb[0].mxu0 %v54
    %v157 = vpop.f32.mrb[0].mxu0
    %v158 = vadd.f32 0.0, %v157
    %v159 = vpop.f32.mrb[0].mxu0
    %160 = vmatprep.mubr.f32.mxu0 0.0
    %161 = vmatmul.mubr.f32.gmra.mrb[0].mxu0 %v57
    %v162 = vpop.f32.mrb[0].mxu0
    %v163 = vadd.f32 0.0, %v162
    %v164 = vpop.f32.mrb[0].mxu0
    %165 = vmatprep.mubr.f32.mxu0 0.0
    %166 = vmatmul.mubr.f32.gmra.mrb[0].mxu0 %v60
    %v167 = vpop.f32.mrb[0].mxu0
    %v168 = vadd.f32 0.0, %v167
    %v169 = vpop.f32.mrb[0].mxu0
    %170 = vmatprep.mubr.f32.mxu0 0.0
    %171 = vmatmul.mubr.f32.gmra.mrb[0].mxu0 %v63
    %v172 = vpop.f32.mrb[0].mxu0
    %v173 = vadd.f32 0.0, %v172
    %v174 = vpop.f32.mrb[0].mxu0
    %175 = vmatprep.mubr.f32.mxu0 0.0
    %176 = vmatmul.mubr.f32.gmra.mrb[0].mxu0 %v66
    %v177 = vpop.f32.mrb[0].mxu0
    %v178 = vadd.f32 0.0, %v177
    %v179 = vpop.f32.mrb[0].mxu0
    %180 = vmatprep.mubr.f32.mxu0 0.0
    %181 = vmatmul.mubr.f32.gmra.mrb[0].mxu0 %v69
    %v182 = vpop.f32.mrb[0].mxu0
    %v183 = vadd.f32 0.0, %v182
    %v184 = vpop.f32.mrb[0].mxu0
    %185 = vmatprep.mubr.f32.mxu0 0.0
    %186 = vmatmul.mubr.f32.gmra.mrb[0].mxu0 %v72
    %v187 = vpop.f32.mrb[0].mxu0
    %v188 = vadd.f32 0.0, %v187
    %v189 = vpop.f32.mrb[0].mxu0
    %190 = vmatprep.mubr.f32.mxu0 0.0
    %191 = vmatmul.mubr.f32.gmra.mrb[0].mxu0 %v75
    %v192 = vpop.f32.mrb[0].mxu0
    %v193 = vadd.f32 0.0, %v192
    %v194 = vpop.f32.mrb[0].mxu0
    %195 = vmatprep.mubr.f32.mxu0 0.0
    %196 = vmatmul.mubr.f32.gmra.mrb[0].mxu0 %v78
    %v197 = vpop.f32.mrb[0].mxu0
    %v198 = vadd.f32 0.0, %v197
    %v199 = vpop.f32.mrb[0].mxu0
    %200 = vmatprep.mubr.f32.mxu0 0.0
    %201 = vmatmul.mubr.f32.gmra.mrb[0].mxu0 %v81
    %v202 = vpop.f32.mrb[0].mxu0
    %v203 = vadd.f32 0.0, %v202
    %v204 = vpop.f32.mrb[0].mxu0
    %205 = vmatprep.mubr.f32.mxu0 0.0
    %206 = vmatmul.mubr.f32.gmra.mrb[0].mxu0 %v84
    %v207 = vpop.f32.mrb[0].mxu0
    %v208 = vadd.f32 0.0, %v207
    %v209 = vpop.f32.mrb[0].mxu0
    %210 = vdwg.mxu0
    %223 = vrot.lane.b32.xlu0 %v153, 120
    %v224 = vpop.permute.xlu0 %223
    %225 = vrot.lane.b32.xlu0 %v158, 120
    %v226 = vpop.permute.xlu0 %225
    %227 = vrot.lane.b32.xlu0 %v163, 120
    %v228 = vpop.permute.xlu0 %227
    %229 = vrot.lane.b32.xlu0 %v168, 120
    %v230 = vpop.permute.xlu0 %229
    %231 = vrot.lane.b32.xlu0 %v173, 120
    %v232 = vpop.permute.xlu0 %231
    %233 = vrot.lane.b32.xlu0 %v178, 120
    %v234 = vpop.permute.xlu0 %233
    %235 = vrot.lane.b32.xlu0 %v183, 120
    %v236 = vpop.permute.xlu0 %235
    %237 = vrot.lane.b32.xlu0 %v188, 120
    %v238 = vpop.permute.xlu0 %237
    %239 = vrot.lane.b32.xlu0 %v193, 120
    %v240 = vpop.permute.xlu0 %239
    %241 = vrot.lane.b32.xlu0 %v198, 120
    %v242 = vpop.permute.xlu0 %241
    %243 = vrot.lane.b32.xlu0 %v203, 120
    %v244 = vpop.permute.xlu0 %243
    %245 = vrot.lane.b32.xlu0 %v208, 120
    %v246 = vpop.permute.xlu0 %245
    %v259 = vmul.f32 %v153, %v224
    %v260 = vmul.f32 %v158, %v226
    %v261 = vmul.f32 %v163, %v228
    %v262 = vmul.f32 %v168, %v230
    %v263 = vmul.f32 %v173, %v232
    %v264 = vmul.f32 %v178, %v234
    %v265 = vmul.f32 %v183, %v236
    %v266 = vmul.f32 %v188, %v238
    %v267 = vmul.f32 %v193, %v240
    %v268 = vmul.f32 %v198, %v242
    %v269 = vmul.f32 %v203, %v244
    %v270 = vmul.f32 %v208, %v246
    %v271 = vsel %vm49, %v259, 0.0
    %v272 = vsel %vm49, %v263, 0.0
    %v273 = vadd.f32 %v271, %v272
    %v274 = vsel %vm49, %v267, 0.0
    %v275 = vadd.f32 %v273, %v274
    %v276 = vsel %vm49, %v260, 0.0
    %v277 = vsel %vm49, %v264, 0.0
    %v278 = vadd.f32 %v276, %v277
    %v279 = vsel %vm49, %v268, 0.0
    %v280 = vadd.f32 %v278, %v279
    %v281 = vsel %vm49, %v261, 0.0
    %v282 = vsel %vm49, %v265, 0.0
    %v283 = vadd.f32 %v281, %v282
    %v284 = vsel %vm49, %v269, 0.0
    %v285 = vadd.f32 %v283, %v284
    %v286 = vsel %vm49, %v262, 0.0
    %v287 = vsel %vm49, %v266, 0.0
    %v288 = vadd.f32 %v286, %v287
    %v289 = vsel %vm49, %v270, 0.0
    %v290 = vadd.f32 %v288, %v289
    %v291 = vmul.f32 %v153, %v153
    %v292 = vmul.f32 %v158, %v158
    %v293 = vmul.f32 %v163, %v163
    %v294 = vmul.f32 %v168, %v168
    %v295 = vmul.f32 %v173, %v173
    %v296 = vmul.f32 %v178, %v178
    %v297 = vmul.f32 %v183, %v183
    %v298 = vmul.f32 %v188, %v188
    %v299 = vmul.f32 %v193, %v193
    %v300 = vmul.f32 %v198, %v198
    %v301 = vmul.f32 %v203, %v203
    %v302 = vmul.f32 %v208, %v208
    %vm303 = vcmask 130112
    %v304 = vsel %vm303, %v291, 0.0
    %v305 = vsel %vm303, %v295, 0.0
    %v306 = vadd.f32 %v304, %v305
    %v307 = vsel %vm303, %v299, 0.0
    %v308 = vadd.f32 %v306, %v307
    %v309 = vsel %vm303, %v292, 0.0
    %v310 = vsel %vm303, %v296, 0.0
    %v311 = vadd.f32 %v309, %v310
    %v312 = vsel %vm303, %v300, 0.0
    %v313 = vadd.f32 %v311, %v312
    %v314 = vsel %vm303, %v293, 0.0
    %v315 = vsel %vm303, %v297, 0.0
    %v316 = vadd.f32 %v314, %v315
    %v317 = vsel %vm303, %v301, 0.0
    %v318 = vadd.f32 %v316, %v317
    %v319 = vsel %vm303, %v294, 0.0
    %v320 = vsel %vm303, %v298, 0.0
    %v321 = vadd.f32 %v319, %v320
    %v322 = vsel %vm303, %v302, 0.0
    %v323 = vadd.f32 %v321, %v322
    %v324 = vadd.f32 %v308, 1e-06
    %v325 = vadd.f32 %v313, 1e-06
    %v326 = vadd.f32 %v318, 1e-06
    %v327 = vadd.f32 %v323, 1e-06
    %v328 = vrcp.pop %v324
    %v329 = vrcp.pop %v325
    %v330 = vrcp.pop %v326
    %v331 = vrcp.pop %v327
    %v332 = vmul.f32 %v324, %v328
    %v333 = vmul.f32 %v325, %v329
    %v334 = vmul.f32 %v326, %v330
    %v335 = vmul.f32 %v327, %v331
    %v336 = vsub.f32 2.0, %v332
    %v337 = vsub.f32 2.0, %v333
    %v338 = vsub.f32 2.0, %v334
    %v339 = vsub.f32 2.0, %v335
    %v340 = vmul.f32 %v328, %v336
    %v341 = vmul.f32 %v329, %v337
    %v342 = vmul.f32 %v330, %v338
    %v343 = vmul.f32 %v331, %v339
    %348 = vrot.lane.b32.xlu0 %v340, 120
    %v349 = vpop.permute.xlu0 %348
    %350 = vrot.lane.b32.xlu0 %v341, 120
    %v351 = vpop.permute.xlu0 %350
    %352 = vrot.lane.b32.xlu0 %v342, 120
    %v353 = vpop.permute.xlu0 %352
    %354 = vrot.lane.b32.xlu0 %v343, 120
    %v355 = vpop.permute.xlu0 %354
    %v360 = vmul.f32 %v275, %v349
    %v361 = vmul.f32 %v280, %v351
    %v362 = vmul.f32 %v285, %v353
    %v363 = vmul.f32 %v290, %v355
    %vm364 = vcmp.lt.f32.partialorder %v275, 0.0
    %vm365 = vcmp.lt.f32.partialorder %v280, 0.0
    %vm366 = vcmp.lt.f32.partialorder %v285, 0.0
    %vm367 = vcmp.lt.f32.partialorder %v290, 0.0
    %v368 = vsel %vm364, %v360, 0.0
    %v369 = vsel %vm365, %v361, 0.0
    %v370 = vsel %vm366, %v362, 0.0
    %v371 = vsel %vm367, %v363, 0.0
    %v372 = vmul.f32 %v368, 0.8
    %v373 = vmul.f32 %v369, 0.8
    %v374 = vmul.f32 %v370, 0.8
    %v375 = vmul.f32 %v371, 0.8
    %v376 = vmul.f32 %v372, %v224
    %v377 = vmul.f32 %v373, %v226
    %v378 = vmul.f32 %v374, %v228
    %v379 = vmul.f32 %v375, %v230
    %v380 = vmul.f32 %v372, %v232
    %v381 = vmul.f32 %v373, %v234
    %v382 = vmul.f32 %v374, %v236
    %v383 = vmul.f32 %v375, %v238
    %v384 = vmul.f32 %v372, %v240
    %v385 = vmul.f32 %v373, %v242
    %v386 = vmul.f32 %v374, %v244
    %v387 = vmul.f32 %v375, %v246
    %v388 = vsub.f32 %v153, %v376
    %v389 = vsub.f32 %v158, %v377
    %v390 = vsub.f32 %v163, %v378
    %v391 = vsub.f32 %v168, %v379
    %v392 = vsub.f32 %v173, %v380
    %v393 = vsub.f32 %v178, %v381
    %v394 = vsub.f32 %v183, %v382
    %v395 = vsub.f32 %v188, %v383
    %v396 = vsub.f32 %v193, %v384
    %v397 = vsub.f32 %v198, %v385
    %v398 = vsub.f32 %v203, %v386
    %v399 = vsub.f32 %v208, %v387
    %v400 = vsel %vm49, %v388, 0.0
    %v401 = vsel %vm49, %v389, 0.0
    %v402 = vadd.f32 %v400, %v401
    %v403 = vrot.slane %v402, 4
    %v404 = vadd.f32 %v402, %v403
    %v405 = vrot.slane %v404, 2
    %v406 = vadd.f32 %v404, %v405
    %v407 = vrot.slane %v406, 1
    %v408 = vadd.f32 %v406, %v407
    %v409 = vsel %vm49, %v390, 0.0
    %v410 = vsel %vm49, %v391, 0.0
    %v411 = vadd.f32 %v409, %v410
    %v412 = vrot.slane %v411, 4
    %v413 = vadd.f32 %v411, %v412
    %v414 = vrot.slane %v413, 2
    %v415 = vadd.f32 %v413, %v414
    %v416 = vrot.slane %v415, 1
    %v417 = vadd.f32 %v415, %v416
    %v418 = vsel %vm49, %v392, 0.0
    %v419 = vsel %vm49, %v393, 0.0
    %v420 = vadd.f32 %v418, %v419
    %v421 = vrot.slane %v420, 4
    %v422 = vadd.f32 %v420, %v421
    %v423 = vrot.slane %v422, 2
    %v424 = vadd.f32 %v422, %v423
    %v425 = vrot.slane %v424, 1
    %v426 = vadd.f32 %v424, %v425
    %v427 = vsel %vm49, %v394, 0.0
    %v428 = vsel %vm49, %v395, 0.0
    %v429 = vadd.f32 %v427, %v428
    %v430 = vrot.slane %v429, 4
    %v431 = vadd.f32 %v429, %v430
    %v432 = vrot.slane %v431, 2
    %v433 = vadd.f32 %v431, %v432
    %v434 = vrot.slane %v433, 1
    %v435 = vadd.f32 %v433, %v434
    %v436 = vsel %vm49, %v396, 0.0
    %v437 = vsel %vm49, %v397, 0.0
    %v438 = vadd.f32 %v436, %v437
    %v439 = vrot.slane %v438, 4
    %v440 = vadd.f32 %v438, %v439
    %v441 = vrot.slane %v440, 2
    %v442 = vadd.f32 %v440, %v441
    %v443 = vrot.slane %v442, 1
    %v444 = vadd.f32 %v442, %v443
    %v445 = vsel %vm49, %v398, 0.0
    %v446 = vsel %vm49, %v399, 0.0
    %v447 = vadd.f32 %v445, %v446
    %v448 = vrot.slane %v447, 4
    %v449 = vadd.f32 %v447, %v448
    %v450 = vrot.slane %v449, 2
    %v451 = vadd.f32 %v449, %v450
    %v452 = vrot.slane %v451, 1
    %v453 = vadd.f32 %v451, %v452
    %v454 = vrcp.pop 16.0
    %v455 = vmul.f32 %v408, %v454
    %v456 = vmul.f32 %v417, %v454
    %v457 = vmul.f32 %v426, %v454
    %v458 = vmul.f32 %v435, %v454
    %v459 = vmul.f32 %v444, %v454
    %v460 = vmul.f32 %v453, %v454
    %v461 = vld [vmem:[%s2] sm:$0xff]
    %v463 = vsel %vm49, %v388, 0
    %v466 = vsel %vm49, %v389, 0
    %v469 = vsel %vm49, %v390, 0
    %v472 = vsel %vm49, %v391, 0
    %v475 = vsel %vm49, %v392, 0
    %v478 = vsel %vm49, %v393, 0
    %v481 = vsel %vm49, %v394, 0
    %v484 = vsel %vm49, %v395, 0
    %v487 = vsel %vm49, %v396, 0
    %v490 = vsel %vm49, %v397, 0
    %v493 = vsel %vm49, %v398, 0
    %v496 = vsel %vm49, %v399, 0
    %498 = vmatprep.subr.mxu0 0.0
    %499 = vmatpush1.msra.mxu0 %v461
    %500 = vmatprep.subr.mxu0 0.0
    %501 = vmatpush1.msra.mxu0 0.0
    %502 = vmatprep.subr.mxu0 0.0
    %503 = vmatpush1.msra.mxu0 0.0
    %504 = vmatprep.subr.mxu0 0.0
    %505 = vmatpush1.msra.mxu0 0.0
    %506 = vmatprep.subr.mxu0 0.0
    %507 = vmatpush1.msra.mxu0 0.0
    %508 = vmatprep.subr.mxu0 0.0
    %509 = vmatpush1.msra.mxu0 0.0
    %510 = vmatprep.subr.mxu0 0.0
    %511 = vmatpush1.msra.mxu0 0.0
    %512 = vmatprep.subr.mxu0 0.0
    %513 = vmatpush1.msra.mxu0 0.0
    %514 = vmatprep.subr.mxu0 0.0
    %515 = vmatpush1.msra.mxu0 0.0
    %516 = vmatprep.subr.mxu0 0.0
    %517 = vmatpush1.msra.mxu0 0.0
    %518 = vmatprep.subr.mxu0 0.0
    %519 = vmatpush1.msra.mxu0 0.0
    %520 = vmatprep.subr.mxu0 0.0
    %521 = vmatpush1.msra.mxu0 0.0
    %522 = vmatprep.subr.mxu0 0.0
    %523 = vmatpush1.msra.mxu0 0.0
    %524 = vmatprep.subr.mxu0 0.0
    %525 = vmatpush1.msra.mxu0 0.0
    %526 = vmatprep.subr.mxu0 0.0
    %527 = vmatpush1.msra.mxu0 0.0
    %528 = vmatprep.subr.mxu0 0.0
    %529 = vmatpush1.msra.mxu0 0.0
    %530 = vmatprep.subr.mxu0 0.0
    %531 = vmatpush1.msra.mxu0 0.0
    %532 = vmatprep.subr.mxu0 0.0
    %533 = vmatpush1.msra.mxu0 0.0
    %534 = vmatprep.subr.mxu0 0.0
    %535 = vmatpush1.msra.mxu0 0.0
    %536 = vmatprep.subr.mxu0 0.0
    %537 = vmatpush1.msra.mxu0 0.0
    %538 = vmatprep.subr.mxu0 0.0
    %539 = vmatpush1.msra.mxu0 0.0
    %540 = vmatprep.subr.mxu0 0.0
    %541 = vmatpush1.msra.mxu0 0.0
    %542 = vmatprep.subr.mxu0 0.0
    %543 = vmatpush1.msra.mxu0 0.0
    %544 = vmatprep.subr.mxu0 0.0
    %545 = vmatpush1.msra.mxu0 0.0
    %546 = vmatprep.subr.mxu0 0.0
    %547 = vmatpush1.msra.mxu0 0.0
    %548 = vmatprep.subr.mxu0 0.0
    %549 = vmatpush1.msra.mxu0 0.0
    %550 = vmatprep.subr.mxu0 0.0
    %551 = vmatpush1.msra.mxu0 0.0
    %552 = vmatprep.subr.mxu0 0.0
    %553 = vmatpush1.msra.mxu0 0.0
    %554 = vmatprep.subr.mxu0 0.0
    %555 = vmatpush1.msra.mxu0 0.0
    %556 = vmatprep.subr.mxu0 0.0
    %557 = vmatpush1.msra.mxu0 0.0
    %558 = vmatprep.subr.mxu0 0.0
    %559 = vmatpush1.msra.mxu0 0.0
    %560 = vmatprep.subr.mxu0 0.0
    %561 = vmatpush1.msra.mxu0 0.0
    %562 = vmatprep.mubr.f32.mxu0 0.0
    %563 = vmatmul.mubr.f32.gmra.mrb[0].mxu0 %v463
    %v564 = vpop.f32.mrb[0].mxu0
    %v565 = vadd.f32 0.0, %v564
    %v566 = vpop.f32.mrb[0].mxu0
    %567 = vmatprep.mubr.f32.mxu0 0.0
    %568 = vmatmul.mubr.f32.gmra.mrb[0].mxu0 %v466
    %v569 = vpop.f32.mrb[0].mxu0
    %v570 = vadd.f32 0.0, %v569
    %v571 = vpop.f32.mrb[0].mxu0
    %572 = vmatprep.mubr.f32.mxu0 0.0
    %573 = vmatmul.mubr.f32.gmra.mrb[0].mxu0 %v469
    %v574 = vpop.f32.mrb[0].mxu0
    %v575 = vadd.f32 0.0, %v574
    %v576 = vpop.f32.mrb[0].mxu0
    %577 = vmatprep.mubr.f32.mxu0 0.0
    %578 = vmatmul.mubr.f32.gmra.mrb[0].mxu0 %v472
    %v579 = vpop.f32.mrb[0].mxu0
    %v580 = vadd.f32 0.0, %v579
    %v581 = vpop.f32.mrb[0].mxu0
    %582 = vmatprep.mubr.f32.mxu0 0.0
    %583 = vmatmul.mubr.f32.gmra.mrb[0].mxu0 %v475
    %v584 = vpop.f32.mrb[0].mxu0
    %v585 = vadd.f32 0.0, %v584
    %v586 = vpop.f32.mrb[0].mxu0
    %587 = vmatprep.mubr.f32.mxu0 0.0
    %588 = vmatmul.mubr.f32.gmra.mrb[0].mxu0 %v478
    %v589 = vpop.f32.mrb[0].mxu0
    %v590 = vadd.f32 0.0, %v589
    %v591 = vpop.f32.mrb[0].mxu0
    %592 = vmatprep.mubr.f32.mxu0 0.0
    %593 = vmatmul.mubr.f32.gmra.mrb[0].mxu0 %v481
    %v594 = vpop.f32.mrb[0].mxu0
    %v595 = vadd.f32 0.0, %v594
    %v596 = vpop.f32.mrb[0].mxu0
    %597 = vmatprep.mubr.f32.mxu0 0.0
    %598 = vmatmul.mubr.f32.gmra.mrb[0].mxu0 %v484
    %v599 = vpop.f32.mrb[0].mxu0
    %v600 = vadd.f32 0.0, %v599
    %v601 = vpop.f32.mrb[0].mxu0
    %602 = vmatprep.mubr.f32.mxu0 0.0
    %603 = vmatmul.mubr.f32.gmra.mrb[0].mxu0 %v487
    %v604 = vpop.f32.mrb[0].mxu0
    %v605 = vadd.f32 0.0, %v604
    %v606 = vpop.f32.mrb[0].mxu0
    %607 = vmatprep.mubr.f32.mxu0 0.0
    %608 = vmatmul.mubr.f32.gmra.mrb[0].mxu0 %v490
    %v609 = vpop.f32.mrb[0].mxu0
    %v610 = vadd.f32 0.0, %v609
    %v611 = vpop.f32.mrb[0].mxu0
    %612 = vmatprep.mubr.f32.mxu0 0.0
    %613 = vmatmul.mubr.f32.gmra.mrb[0].mxu0 %v493
    %v614 = vpop.f32.mrb[0].mxu0
    %v615 = vadd.f32 0.0, %v614
    %v616 = vpop.f32.mrb[0].mxu0
    %617 = vmatprep.mubr.f32.mxu0 0.0
    %618 = vmatmul.mubr.f32.gmra.mrb[0].mxu0 %v496
    %v619 = vpop.f32.mrb[0].mxu0
    %v620 = vadd.f32 0.0, %v619
    %v621 = vpop.f32.mrb[0].mxu0
    %622 = vdwg.mxu0
    %v623 = vld [vmem:[%s3] sm:$0xff]
    %vm630 = vcmask 1041409
    %v631 = vsel %vm630, %v456, %v455
    %vm632 = vcmask 1042434
    %v633 = vsel %vm632, %v457, %v631
    %vm634 = vcmask 1043459
    %v635 = vsel %vm634, %v458, %v633
    %vm636 = vcmask 1044484
    %v637 = vsel %vm636, %v459, %v635
    %vm638 = vcmask 1045509
    %v639 = vsel %vm638, %v460, %v637
    %v640 = vsel %vm49, %v639, 0
    %642 = vmatprep.subr.mxu0 0.0
    %643 = vmatpush1.msra.mxu0 %v623
    %644 = vmatprep.subr.mxu0 0.0
    %645 = vmatpush1.msra.mxu0 0.0
    %646 = vmatprep.subr.mxu0 0.0
    %647 = vmatpush1.msra.mxu0 0.0
    %648 = vmatprep.subr.mxu0 0.0
    %649 = vmatpush1.msra.mxu0 0.0
    %650 = vmatprep.subr.mxu0 0.0
    %651 = vmatpush1.msra.mxu0 0.0
    %652 = vmatprep.subr.mxu0 0.0
    %653 = vmatpush1.msra.mxu0 0.0
    %654 = vmatprep.subr.mxu0 0.0
    %655 = vmatpush1.msra.mxu0 0.0
    %656 = vmatprep.subr.mxu0 0.0
    %657 = vmatpush1.msra.mxu0 0.0
    %658 = vmatprep.subr.mxu0 0.0
    %659 = vmatpush1.msra.mxu0 0.0
    %660 = vmatprep.subr.mxu0 0.0
    %661 = vmatpush1.msra.mxu0 0.0
    %662 = vmatprep.subr.mxu0 0.0
    %663 = vmatpush1.msra.mxu0 0.0
    %664 = vmatprep.subr.mxu0 0.0
    %665 = vmatpush1.msra.mxu0 0.0
    %666 = vmatprep.subr.mxu0 0.0
    %667 = vmatpush1.msra.mxu0 0.0
    %668 = vmatprep.subr.mxu0 0.0
    %669 = vmatpush1.msra.mxu0 0.0
    %670 = vmatprep.subr.mxu0 0.0
    %671 = vmatpush1.msra.mxu0 0.0
    %672 = vmatprep.subr.mxu0 0.0
    %673 = vmatpush1.msra.mxu0 0.0
    %674 = vmatprep.subr.mxu0 0.0
    %675 = vmatpush1.msra.mxu0 0.0
    %676 = vmatprep.subr.mxu0 0.0
    %677 = vmatpush1.msra.mxu0 0.0
    %678 = vmatprep.subr.mxu0 0.0
    %679 = vmatpush1.msra.mxu0 0.0
    %680 = vmatprep.subr.mxu0 0.0
    %681 = vmatpush1.msra.mxu0 0.0
    %682 = vmatprep.subr.mxu0 0.0
    %683 = vmatpush1.msra.mxu0 0.0
    %684 = vmatprep.subr.mxu0 0.0
    %685 = vmatpush1.msra.mxu0 0.0
    %686 = vmatprep.subr.mxu0 0.0
    %687 = vmatpush1.msra.mxu0 0.0
    %688 = vmatprep.subr.mxu0 0.0
    %689 = vmatpush1.msra.mxu0 0.0
    %690 = vmatprep.subr.mxu0 0.0
    %691 = vmatpush1.msra.mxu0 0.0
    %692 = vmatprep.subr.mxu0 0.0
    %693 = vmatpush1.msra.mxu0 0.0
    %694 = vmatprep.subr.mxu0 0.0
    %695 = vmatpush1.msra.mxu0 0.0
    %696 = vmatprep.subr.mxu0 0.0
    %697 = vmatpush1.msra.mxu0 0.0
    %698 = vmatprep.subr.mxu0 0.0
    %699 = vmatpush1.msra.mxu0 0.0
    %700 = vmatprep.subr.mxu0 0.0
    %701 = vmatpush1.msra.mxu0 0.0
    %702 = vmatprep.subr.mxu0 0.0
    %703 = vmatpush1.msra.mxu0 0.0
    %704 = vmatprep.subr.mxu0 0.0
    %705 = vmatpush1.msra.mxu0 0.0
    %706 = vmatprep.mubr.f32.mxu0 0.0
    %707 = vmatmul.mubr.f32.gmra.mrb[0].mxu0 %v640
    %v708 = vpop.f32.mrb[0].mxu0
    %v709 = vadd.f32 0.0, %v708
    %v710 = vpop.f32.mrb[0].mxu0
    %711 = vdwg.mxu0
    %v713 = vcombine.high %v709, %v709
    %v715 = vunpack.c.l.s4 1966171168
    %v716 = vunpack.c.0.s8 %v715
    %v717 = vlaneseq
    %v718 = vshrl.u32 %v717, 7
    %v719 = vsub.s32 %v716, %v718
    %v720 = vrot.slane %v709, %v719
    %v722 = vunpack.c.l.s4 1966171168
    %v723 = vunpack.c.0.s8 %v722
    %v724 = vlaneseq
    %v725 = vshrl.u32 %v724, 7
    %v726 = vsub.s32 %v723, %v725
    %v727 = vrot.slane %v713, %v726
    %v728 = vcombine.high %v720, %v720
    %v729 = vcombine.high %v727, %v727
    %v731 = vunpack.c.l.s4 1966171168
    %v732 = vunpack.c.0.s8 %v731
    %v733 = vlaneseq
    %v734 = vshrl.u32 %v733, 7
    %v735 = vsub.s32 %v732, %v734
    %v736 = vrot.slane %v720, %v735
    %v738 = vunpack.c.l.s4 1966171168
    %v739 = vunpack.c.0.s8 %v738
    %v740 = vlaneseq
    %v741 = vshrl.u32 %v740, 7
    %v742 = vsub.s32 %v739, %v741
    %v743 = vrot.slane %v727, %v742
    %v745 = vunpack.c.l.s4 1966171168
    %v746 = vunpack.c.0.s8 %v745
    %v747 = vlaneseq
    %v748 = vshrl.u32 %v747, 7
    %v749 = vsub.s32 %v746, %v748
    %v750 = vrot.slane %v728, %v749
    %v752 = vunpack.c.l.s4 1966171168
    %v753 = vunpack.c.0.s8 %v752
    %v754 = vlaneseq
    %v755 = vshrl.u32 %v754, 7
    %v756 = vsub.s32 %v753, %v755
    %v757 = vrot.slane %v729, %v756
    %v758 = vcombine.high %v736, %v736
    %v759 = vcombine.high %v750, %v750
    %v760 = vlaneseq
    %v761 = vshrl.u32 %v760, 7
    %v762 = vsub.s32 0, %v761
    %v763 = vrot.slane %v736, %v762
    %v764 = vlaneseq
    %v765 = vshrl.u32 %v764, 7
    %v766 = vsub.s32 0, %v765
    %v767 = vrot.slane %v750, %v766
    %v768 = vlaneseq
    %v769 = vshrl.u32 %v768, 7
    %v770 = vsub.s32 0, %v769
    %v771 = vrot.slane %v758, %v770
    %v772 = vlaneseq
    %v773 = vshrl.u32 %v772, 7
    %v774 = vsub.s32 0, %v773
    %v775 = vrot.slane %v759, %v774
    %v776 = vlaneseq
    %v777 = vshrl.u32 %v776, 7
    %v778 = vsub.s32 0, %v777
    %v779 = vrot.slane %v743, %v778
    %v780 = vlaneseq
    %v781 = vshrl.u32 %v780, 7
    %v782 = vsub.s32 0, %v781
    %v783 = vrot.slane %v757, %v782
    %v790 = vadd.f32 %v565, %v763
    %v791 = vadd.f32 %v570, %v763
    %v792 = vadd.f32 %v575, %v767
    %v793 = vadd.f32 %v580, %v767
    %v794 = vadd.f32 %v585, %v771
    %v795 = vadd.f32 %v590, %v771
    %v796 = vadd.f32 %v595, %v775
    %v797 = vadd.f32 %v600, %v775
    %v798 = vadd.f32 %v605, %v779
    %v799 = vadd.f32 %v610, %v779
    %v800 = vadd.f32 %v615, %v783
    %v801 = vadd.f32 %v620, %v783
    %v802 = vld [vmem:[%s4] sm:$0x1]
    %v803 = vld [vmem:[%s5] sm:$0x1]
    %v804 = vmul.f32 %v790, %v790
    %v805 = vmul.f32 %v791, %v791
    %v806 = vmul.f32 %v792, %v792
    %v807 = vmul.f32 %v793, %v793
    %v808 = vmul.f32 %v794, %v794
    %v809 = vmul.f32 %v795, %v795
    %v810 = vmul.f32 %v796, %v796
    %v811 = vmul.f32 %v797, %v797
    %v812 = vmul.f32 %v798, %v798
    %v813 = vmul.f32 %v799, %v799
    %v814 = vmul.f32 %v800, %v800
    %v815 = vmul.f32 %v801, %v801
    %v816 = vsel %vm49, %v804, 0.0
    %v817 = vsel %vm49, %v808, 0.0
    %v818 = vadd.f32 %v816, %v817
    %v819 = vsel %vm49, %v812, 0.0
    %v820 = vadd.f32 %v818, %v819
    %v821 = vsel %vm49, %v805, 0.0
    %v822 = vsel %vm49, %v809, 0.0
    %v823 = vadd.f32 %v821, %v822
    %v824 = vsel %vm49, %v813, 0.0
    %v825 = vadd.f32 %v823, %v824
    %v826 = vsel %vm49, %v806, 0.0
    %v827 = vsel %vm49, %v810, 0.0
    %v828 = vadd.f32 %v826, %v827
    %v829 = vsel %vm49, %v814, 0.0
    %v830 = vadd.f32 %v828, %v829
    %v831 = vsel %vm49, %v807, 0.0
    %v832 = vsel %vm49, %v811, 0.0
    %v833 = vadd.f32 %v831, %v832
    %v834 = vsel %vm49, %v815, 0.0
    %v835 = vadd.f32 %v833, %v834
    %v836 = vrsqrt.pop %v820
    %v837 = vmul.f32 %v820, %v836
    %vm838 = vcmp.eq.f32.partialorder %v820, inf
    %v839 = vsel %vm838, %v820, %v837
    %vm840 = vcmp.eq.f32.partialorder %v820, 0.0
    %v841 = vand.u32 %v820, 2147483648
    %v842 = vsel %vm840, %v841, %v839
    %v843 = vrsqrt.pop %v825
    %v844 = vmul.f32 %v825, %v843
    %vm845 = vcmp.eq.f32.partialorder %v825, inf
    %v846 = vsel %vm845, %v825, %v844
    %vm847 = vcmp.eq.f32.partialorder %v825, 0.0
    %v848 = vand.u32 %v825, 2147483648
    %v849 = vsel %vm847, %v848, %v846
    %v850 = vrsqrt.pop %v830
    %v851 = vmul.f32 %v830, %v850
    %vm852 = vcmp.eq.f32.partialorder %v830, inf
    %v853 = vsel %vm852, %v830, %v851
    %vm854 = vcmp.eq.f32.partialorder %v830, 0.0
    %v855 = vand.u32 %v830, 2147483648
    %v856 = vsel %vm854, %v855, %v853
    %v857 = vrsqrt.pop %v835
    %v858 = vmul.f32 %v835, %v857
    %vm859 = vcmp.eq.f32.partialorder %v835, inf
    %v860 = vsel %vm859, %v835, %v858
    %vm861 = vcmp.eq.f32.partialorder %v835, 0.0
    %v862 = vand.u32 %v835, 2147483648
    %v863 = vsel %vm861, %v862, %v860
    %v864 = vadd.f32 %v842, 1e-06
    %v865 = vadd.f32 %v849, 1e-06
    %v866 = vadd.f32 %v856, 1e-06
    %v867 = vadd.f32 %v863, 1e-06
    %v868 = vsel %vm49, %v864, 0.0
    %v869 = vsel %vm49, %v865, 0.0
    %v870 = vadd.f32 %v868, %v869
    %v871 = vsel %vm49, %v866, 0.0
    %v872 = vadd.f32 %v870, %v871
    %v873 = vsel %vm49, %v867, 0.0
    %v874 = vadd.f32 %v872, %v873
    %v875 = vrot.slane %v874, 4
    %v876 = vadd.f32 %v874, %v875
    %v877 = vrot.slane %v876, 2
    %v878 = vadd.f32 %v876, %v877
    %v879 = vrot.slane %v878, 1
    %v880 = vadd.f32 %v878, %v879
    %v881 = vrcp.pop 32.0
    %v882 = vmul.f32 %v880, %v881
    %v883 = vsub.f32 %v864, %v882
    %v884 = vsub.f32 %v865, %v882
    %v885 = vsub.f32 %v866, %v882
    %v886 = vsub.f32 %v867, %v882
    %v887 = vmul.f32 %v883, %v883
    %v888 = vmul.f32 %v884, %v884
    %v889 = vmul.f32 %v885, %v885
    %v890 = vmul.f32 %v886, %v886
    %v891 = vsel %vm49, %v887, 0.0
    %v892 = vsel %vm49, %v888, 0.0
    %v893 = vadd.f32 %v891, %v892
    %v894 = vsel %vm49, %v889, 0.0
    %v895 = vadd.f32 %v893, %v894
    %v896 = vsel %vm49, %v890, 0.0
    %v897 = vadd.f32 %v895, %v896
    %v898 = vrot.slane %v897, 4
    %v899 = vadd.f32 %v897, %v898
    %v900 = vrot.slane %v899, 2
    %v901 = vadd.f32 %v899, %v900
    %v902 = vrot.slane %v901, 1
    %v903 = vadd.f32 %v901, %v902
    %v904 = vmul.f32 %v903, %v881
    %v905 = vadd.f32 %v904, 1e-05
    %v906 = vrsqrt.pop %v905
    %v907 = vmul.f32 %v883, %v906
    %v908 = vmul.f32 %v884, %v906
    %v909 = vmul.f32 %v885, %v906
    %v910 = vmul.f32 %v886, %v906
    %v912 = vlaneseq
    %v913 = vshrl.u32 %v912, 7
    %v914 = vsub.s32 0, %v913
    %v915 = vrot.slane %v802, %v914
    %v917 = vmul.f32 %v907, %v915
    %v918 = vmul.f32 %v908, %v915
    %v919 = vmul.f32 %v909, %v915
    %v920 = vmul.f32 %v910, %v915
    %v922 = vlaneseq
    %v923 = vshrl.u32 %v922, 7
    %v924 = vsub.s32 0, %v923
    %v925 = vrot.slane %v803, %v924
    %v927 = vadd.f32 %v917, %v925
    %v928 = vadd.f32 %v918, %v925
    %v929 = vadd.f32 %v919, %v925
    %v930 = vadd.f32 %v920, %v925
    %v931 = vrcp.pop %v864
    %v932 = vrcp.pop %v865
    %v933 = vrcp.pop %v866
    %v934 = vrcp.pop %v867
    %v935 = vmul.f32 %v864, %v931
    %v936 = vmul.f32 %v865, %v932
    %v937 = vmul.f32 %v866, %v933
    %v938 = vmul.f32 %v867, %v934
    %v939 = vsub.f32 2.0, %v935
    %v940 = vsub.f32 2.0, %v936
    %v941 = vsub.f32 2.0, %v937
    %v942 = vsub.f32 2.0, %v938
    %v943 = vmul.f32 %v931, %v939
    %v944 = vmul.f32 %v932, %v940
    %v945 = vmul.f32 %v933, %v941
    %v946 = vmul.f32 %v934, %v942
    %v947 = vmul.f32 %v927, %v943
    %v948 = vmul.f32 %v928, %v944
    %v949 = vmul.f32 %v929, %v945
    %v950 = vmul.f32 %v930, %v946
    %v951 = vmul.f32 %v790, %v947
    %v952 = vmul.f32 %v791, %v948
    %v953 = vmul.f32 %v792, %v949
    %v954 = vmul.f32 %v793, %v950
    %v955 = vmul.f32 %v794, %v947
    %v956 = vmul.f32 %v795, %v948
    %v957 = vmul.f32 %v796, %v949
    %v958 = vmul.f32 %v797, %v950
    %v959 = vmul.f32 %v798, %v947
    %v960 = vmul.f32 %v799, %v948
    %v961 = vmul.f32 %v800, %v949
    %v962 = vmul.f32 %v801, %v950
    %975 = vrot.lane.b32.xlu0 %v790, 120
    %v976 = vpop.permute.xlu0 %975
    %977 = vrot.lane.b32.xlu0 %v791, 120
    %v978 = vpop.permute.xlu0 %977
    %979 = vrot.lane.b32.xlu0 %v792, 120
    %v980 = vpop.permute.xlu0 %979
    %981 = vrot.lane.b32.xlu0 %v793, 120
    %v982 = vpop.permute.xlu0 %981
    %983 = vrot.lane.b32.xlu0 %v794, 120
    %v984 = vpop.permute.xlu0 %983
    %985 = vrot.lane.b32.xlu0 %v795, 120
    %v986 = vpop.permute.xlu0 %985
    %987 = vrot.lane.b32.xlu0 %v796, 120
    %v988 = vpop.permute.xlu0 %987
    %989 = vrot.lane.b32.xlu0 %v797, 120
    %v990 = vpop.permute.xlu0 %989
    %991 = vrot.lane.b32.xlu0 %v798, 120
    %v992 = vpop.permute.xlu0 %991
    %993 = vrot.lane.b32.xlu0 %v799, 120
    %v994 = vpop.permute.xlu0 %993
    %995 = vrot.lane.b32.xlu0 %v800, 120
    %v996 = vpop.permute.xlu0 %995
    %997 = vrot.lane.b32.xlu0 %v801, 120
    %v998 = vpop.permute.xlu0 %997
    %v1011 = vmul.f32 %v951, %v976
    %v1012 = vmul.f32 %v952, %v978
    %v1013 = vmul.f32 %v953, %v980
    %v1014 = vmul.f32 %v954, %v982
    %v1015 = vmul.f32 %v955, %v984
    %v1016 = vmul.f32 %v956, %v986
    %v1017 = vmul.f32 %v957, %v988
    %v1018 = vmul.f32 %v958, %v990
    %v1019 = vmul.f32 %v959, %v992
    %v1020 = vmul.f32 %v960, %v994
    %v1021 = vmul.f32 %v961, %v996
    %v1022 = vmul.f32 %v962, %v998
    %v1023 = vsel %vm49, %v1011, 0.0
    %v1024 = vsel %vm49, %v1015, 0.0
    %v1025 = vadd.f32 %v1023, %v1024
    %v1026 = vsel %vm49, %v1019, 0.0
    %v1027 = vadd.f32 %v1025, %v1026
    %v1028 = vsel %vm49, %v1012, 0.0
    %v1029 = vsel %vm49, %v1016, 0.0
    %v1030 = vadd.f32 %v1028, %v1029
    %v1031 = vsel %vm49, %v1020, 0.0
    %v1032 = vadd.f32 %v1030, %v1031
    %v1033 = vsel %vm49, %v1013, 0.0
    %v1034 = vsel %vm49, %v1017, 0.0
    %v1035 = vadd.f32 %v1033, %v1034
    %v1036 = vsel %vm49, %v1021, 0.0
    %v1037 = vadd.f32 %v1035, %v1036
    %v1038 = vsel %vm49, %v1014, 0.0
    %v1039 = vsel %vm49, %v1018, 0.0
    %v1040 = vadd.f32 %v1038, %v1039
    %v1041 = vsel %vm49, %v1022, 0.0
    %v1042 = vadd.f32 %v1040, %v1041
    %v1043 = vsel %vm303, %v804, 0.0
    %v1044 = vsel %vm303, %v808, 0.0
    %v1045 = vadd.f32 %v1043, %v1044
    %v1046 = vsel %vm303, %v812, 0.0
    %v1047 = vadd.f32 %v1045, %v1046
    %v1048 = vsel %vm303, %v805, 0.0
    %v1049 = vsel %vm303, %v809, 0.0
    %v1050 = vadd.f32 %v1048, %v1049
    %v1051 = vsel %vm303, %v813, 0.0
    %v1052 = vadd.f32 %v1050, %v1051
    %v1053 = vsel %vm303, %v806, 0.0
    %v1054 = vsel %vm303, %v810, 0.0
    %v1055 = vadd.f32 %v1053, %v1054
    %v1056 = vsel %vm303, %v814, 0.0
    %v1057 = vadd.f32 %v1055, %v1056
    %v1058 = vsel %vm303, %v807, 0.0
    %v1059 = vsel %vm303, %v811, 0.0
    %v1060 = vadd.f32 %v1058, %v1059
    %v1061 = vsel %vm303, %v815, 0.0
    %v1062 = vadd.f32 %v1060, %v1061
    %v1063 = vadd.f32 %v1047, 1e-06
    %v1064 = vadd.f32 %v1052, 1e-06
    %v1065 = vadd.f32 %v1057, 1e-06
    %v1066 = vadd.f32 %v1062, 1e-06
    %v1067 = vrcp.pop %v1063
    %v1068 = vrcp.pop %v1064
    %v1069 = vrcp.pop %v1065
    %v1070 = vrcp.pop %v1066
    %v1071 = vmul.f32 %v1063, %v1067
    %v1072 = vmul.f32 %v1064, %v1068
    %v1073 = vmul.f32 %v1065, %v1069
    %v1074 = vmul.f32 %v1066, %v1070
    %v1075 = vsub.f32 2.0, %v1071
    %v1076 = vsub.f32 2.0, %v1072
    %v1077 = vsub.f32 2.0, %v1073
    %v1078 = vsub.f32 2.0, %v1074
    %v1079 = vmul.f32 %v1067, %v1075
    %v1080 = vmul.f32 %v1068, %v1076
    %v1081 = vmul.f32 %v1069, %v1077
    %v1082 = vmul.f32 %v1070, %v1078
    %1087 = vrot.lane.b32.xlu0 %v1079, 120
    %v1088 = vpop.permute.xlu0 %1087
    %1089 = vrot.lane.b32.xlu0 %v1080, 120
    %v1090 = vpop.permute.xlu0 %1089
    %1091 = vrot.lane.b32.xlu0 %v1081, 120
    %v1092 = vpop.permute.xlu0 %1091
    %1093 = vrot.lane.b32.xlu0 %v1082, 120
    %v1094 = vpop.permute.xlu0 %1093
    %v1099 = vmul.f32 %v1027, %v1088
    %v1100 = vmul.f32 %v1032, %v1090
    %v1101 = vmul.f32 %v1037, %v1092
    %v1102 = vmul.f32 %v1042, %v1094
    %vm1103 = vcmp.lt.f32.partialorder %v1027, 0.0
    %vm1104 = vcmp.lt.f32.partialorder %v1032, 0.0
    %vm1105 = vcmp.lt.f32.partialorder %v1037, 0.0
    %vm1106 = vcmp.lt.f32.partialorder %v1042, 0.0
    %v1107 = vsel %vm1103, %v1099, 0.0
    %v1108 = vsel %vm1104, %v1100, 0.0
    %v1109 = vsel %vm1105, %v1101, 0.0
    %v1110 = vsel %vm1106, %v1102, 0.0
    %v1111 = vmul.f32 %v1107, 0.8
    %v1112 = vmul.f32 %v1108, 0.8
    %v1113 = vmul.f32 %v1109, 0.8
    %v1114 = vmul.f32 %v1110, 0.8
    %v1115 = vmul.f32 %v1111, %v976
    %v1116 = vmul.f32 %v1112, %v978
    %v1117 = vmul.f32 %v1113, %v980
    %v1118 = vmul.f32 %v1114, %v982
    %v1119 = vmul.f32 %v1111, %v984
    %v1120 = vmul.f32 %v1112, %v986
    %v1121 = vmul.f32 %v1113, %v988
    %v1122 = vmul.f32 %v1114, %v990
    %v1123 = vmul.f32 %v1111, %v992
    %v1124 = vmul.f32 %v1112, %v994
    %v1125 = vmul.f32 %v1113, %v996
    %v1126 = vmul.f32 %v1114, %v998
    %v1127 = vsub.f32 %v951, %v1115
    %v1128 = vsub.f32 %v952, %v1116
    %v1129 = vsub.f32 %v953, %v1117
    %v1130 = vsub.f32 %v954, %v1118
    %v1131 = vsub.f32 %v955, %v1119
    %v1132 = vsub.f32 %v956, %v1120
    %v1133 = vsub.f32 %v957, %v1121
    %v1134 = vsub.f32 %v958, %v1122
    %v1135 = vsub.f32 %v959, %v1123
    %v1136 = vsub.f32 %v960, %v1124
    %v1137 = vsub.f32 %v961, %v1125
    %v1138 = vsub.f32 %v962, %v1126
    %v1139 = vld [vmem:[%s6] sm:$0xff]
    %v1141 = vsel %vm49, %v1127, 0
    %v1144 = vsel %vm49, %v1128, 0
    %v1147 = vsel %vm49, %v1129, 0
    %v1150 = vsel %vm49, %v1130, 0
    %v1153 = vsel %vm49, %v1131, 0
    %v1156 = vsel %vm49, %v1132, 0
    %v1159 = vsel %vm49, %v1133, 0
    %v1162 = vsel %vm49, %v1134, 0
    %v1165 = vsel %vm49, %v1135, 0
    %v1168 = vsel %vm49, %v1136, 0
    %v1171 = vsel %vm49, %v1137, 0
    %v1174 = vsel %vm49, %v1138, 0
    %1176 = vmatprep.subr.mxu0 0.0
    %1177 = vmatpush1.msra.mxu0 %v1139
    %1178 = vmatprep.subr.mxu0 0.0
    %1179 = vmatpush1.msra.mxu0 0.0
    %1180 = vmatprep.subr.mxu0 0.0
    %1181 = vmatpush1.msra.mxu0 0.0
    %1182 = vmatprep.subr.mxu0 0.0
    %1183 = vmatpush1.msra.mxu0 0.0
    %1184 = vmatprep.subr.mxu0 0.0
    %1185 = vmatpush1.msra.mxu0 0.0
    %1186 = vmatprep.subr.mxu0 0.0
    %1187 = vmatpush1.msra.mxu0 0.0
    %1188 = vmatprep.subr.mxu0 0.0
    %1189 = vmatpush1.msra.mxu0 0.0
    %1190 = vmatprep.subr.mxu0 0.0
    %1191 = vmatpush1.msra.mxu0 0.0
    %1192 = vmatprep.subr.mxu0 0.0
    %1193 = vmatpush1.msra.mxu0 0.0
    %1194 = vmatprep.subr.mxu0 0.0
    %1195 = vmatpush1.msra.mxu0 0.0
    %1196 = vmatprep.subr.mxu0 0.0
    %1197 = vmatpush1.msra.mxu0 0.0
    %1198 = vmatprep.subr.mxu0 0.0
    %1199 = vmatpush1.msra.mxu0 0.0
    %1200 = vmatprep.subr.mxu0 0.0
    %1201 = vmatpush1.msra.mxu0 0.0
    %1202 = vmatprep.subr.mxu0 0.0
    %1203 = vmatpush1.msra.mxu0 0.0
    %1204 = vmatprep.subr.mxu0 0.0
    %1205 = vmatpush1.msra.mxu0 0.0
    %1206 = vmatprep.subr.mxu0 0.0
    %1207 = vmatpush1.msra.mxu0 0.0
    %1208 = vmatprep.subr.mxu0 0.0
    %1209 = vmatpush1.msra.mxu0 0.0
    %1210 = vmatprep.subr.mxu0 0.0
    %1211 = vmatpush1.msra.mxu0 0.0
    %1212 = vmatprep.subr.mxu0 0.0
    %1213 = vmatpush1.msra.mxu0 0.0
    %1214 = vmatprep.subr.mxu0 0.0
    %1215 = vmatpush1.msra.mxu0 0.0
    %1216 = vmatprep.subr.mxu0 0.0
    %1217 = vmatpush1.msra.mxu0 0.0
    %1218 = vmatprep.subr.mxu0 0.0
    %1219 = vmatpush1.msra.mxu0 0.0
    %1220 = vmatprep.subr.mxu0 0.0
    %1221 = vmatpush1.msra.mxu0 0.0
    %1222 = vmatprep.subr.mxu0 0.0
    %1223 = vmatpush1.msra.mxu0 0.0
    %1224 = vmatprep.subr.mxu0 0.0
    %1225 = vmatpush1.msra.mxu0 0.0
    %1226 = vmatprep.subr.mxu0 0.0
    %1227 = vmatpush1.msra.mxu0 0.0
    %1228 = vmatprep.subr.mxu0 0.0
    %1229 = vmatpush1.msra.mxu0 0.0
    %1230 = vmatprep.subr.mxu0 0.0
    %1231 = vmatpush1.msra.mxu0 0.0
    %1232 = vmatprep.subr.mxu0 0.0
    %1233 = vmatpush1.msra.mxu0 0.0
    %1234 = vmatprep.subr.mxu0 0.0
    %1235 = vmatpush1.msra.mxu0 0.0
    %1236 = vmatprep.subr.mxu0 0.0
    %1237 = vmatpush1.msra.mxu0 0.0
    %1238 = vmatprep.subr.mxu0 0.0
    %1239 = vmatpush1.msra.mxu0 0.0
    %1240 = vmatprep.mubr.f32.mxu0 0.0
    %1241 = vmatmul.mubr.f32.gmra.mrb[0].mxu0 %v1141
    %v1242 = vpop.f32.mrb[0].mxu0
    %v1243 = vadd.f32 0.0, %v1242
    %v1244 = vpop.f32.mrb[0].mxu0
    %1245 = vmatprep.mubr.f32.mxu0 0.0
    %1246 = vmatmul.mubr.f32.gmra.mrb[0].mxu0 %v1144
    %v1247 = vpop.f32.mrb[0].mxu0
    %v1248 = vadd.f32 0.0, %v1247
    %v1249 = vpop.f32.mrb[0].mxu0
    %1250 = vmatprep.mubr.f32.mxu0 0.0
    %1251 = vmatmul.mubr.f32.gmra.mrb[0].mxu0 %v1147
    %v1252 = vpop.f32.mrb[0].mxu0
    %v1253 = vadd.f32 0.0, %v1252
    %v1254 = vpop.f32.mrb[0].mxu0
    %1255 = vmatprep.mubr.f32.mxu0 0.0
    %1256 = vmatmul.mubr.f32.gmra.mrb[0].mxu0 %v1150
    %v1257 = vpop.f32.mrb[0].mxu0
    %v1258 = vadd.f32 0.0, %v1257
    %v1259 = vpop.f32.mrb[0].mxu0
    %1260 = vmatprep.mubr.f32.mxu0 0.0
    %1261 = vmatmul.mubr.f32.gmra.mrb[0].mxu0 %v1153
    %v1262 = vpop.f32.mrb[0].mxu0
    %v1263 = vadd.f32 0.0, %v1262
    %v1264 = vpop.f32.mrb[0].mxu0
    %1265 = vmatprep.mubr.f32.mxu0 0.0
    %1266 = vmatmul.mubr.f32.gmra.mrb[0].mxu0 %v1156
    %v1267 = vpop.f32.mrb[0].mxu0
    %v1268 = vadd.f32 0.0, %v1267
    %v1269 = vpop.f32.mrb[0].mxu0
    %1270 = vmatprep.mubr.f32.mxu0 0.0
    %1271 = vmatmul.mubr.f32.gmra.mrb[0].mxu0 %v1159
    %v1272 = vpop.f32.mrb[0].mxu0
    %v1273 = vadd.f32 0.0, %v1272
    %v1274 = vpop.f32.mrb[0].mxu0
    %1275 = vmatprep.mubr.f32.mxu0 0.0
    %1276 = vmatmul.mubr.f32.gmra.mrb[0].mxu0 %v1162
    %v1277 = vpop.f32.mrb[0].mxu0
    %v1278 = vadd.f32 0.0, %v1277
    %v1279 = vpop.f32.mrb[0].mxu0
    %1280 = vmatprep.mubr.f32.mxu0 0.0
    %1281 = vmatmul.mubr.f32.gmra.mrb[0].mxu0 %v1165
    %v1282 = vpop.f32.mrb[0].mxu0
    %v1283 = vadd.f32 0.0, %v1282
    %v1284 = vpop.f32.mrb[0].mxu0
    %1285 = vmatprep.mubr.f32.mxu0 0.0
    %1286 = vmatmul.mubr.f32.gmra.mrb[0].mxu0 %v1168
    %v1287 = vpop.f32.mrb[0].mxu0
    %v1288 = vadd.f32 0.0, %v1287
    %v1289 = vpop.f32.mrb[0].mxu0
    %1290 = vmatprep.mubr.f32.mxu0 0.0
    %1291 = vmatmul.mubr.f32.gmra.mrb[0].mxu0 %v1171
    %v1292 = vpop.f32.mrb[0].mxu0
    %v1293 = vadd.f32 0.0, %v1292
    %v1294 = vpop.f32.mrb[0].mxu0
    %1295 = vmatprep.mubr.f32.mxu0 0.0
    %1296 = vmatmul.mubr.f32.gmra.mrb[0].mxu0 %v1174
    %v1297 = vpop.f32.mrb[0].mxu0
    %v1298 = vadd.f32 0.0, %v1297
    %v1299 = vpop.f32.mrb[0].mxu0
    %1300 = vdwg.mxu0
    %v1301 = vld [vmem:[%s7] sm:$0x1]
    %v1302 = vld [vmem:[%s8] sm:$0x1]
    %v1303 = vmul.f32 %v1243, %v1243
    %v1304 = vmul.f32 %v1248, %v1248
    %v1305 = vmul.f32 %v1253, %v1253
    %v1306 = vmul.f32 %v1258, %v1258
    %v1307 = vmul.f32 %v1263, %v1263
    %v1308 = vmul.f32 %v1268, %v1268
    %v1309 = vmul.f32 %v1273, %v1273
    %v1310 = vmul.f32 %v1278, %v1278
    %v1311 = vmul.f32 %v1283, %v1283
    %v1312 = vmul.f32 %v1288, %v1288
    %v1313 = vmul.f32 %v1293, %v1293
    %v1314 = vmul.f32 %v1298, %v1298
    %vm1315 = vcmask 31744
    %v1316 = vsel %vm1315, %v1303, 0.0
    %v1317 = vsel %vm1315, %v1307, 0.0
    %v1318 = vadd.f32 %v1316, %v1317
    %v1319 = vsel %vm1315, %v1311, 0.0
    %v1320 = vadd.f32 %v1318, %v1319
    %v1321 = vsel %vm1315, %v1304, 0.0
    %v1322 = vsel %vm1315, %v1308, 0.0
    %v1323 = vadd.f32 %v1321, %v1322
    %v1324 = vsel %vm1315, %v1312, 0.0
    %v1325 = vadd.f32 %v1323, %v1324
    %v1326 = vsel %vm1315, %v1305, 0.0
    %v1327 = vsel %vm1315, %v1309, 0.0
    %v1328 = vadd.f32 %v1326, %v1327
    %v1329 = vsel %vm1315, %v1313, 0.0
    %v1330 = vadd.f32 %v1328, %v1329
    %v1331 = vsel %vm1315, %v1306, 0.0
    %v1332 = vsel %vm1315, %v1310, 0.0
    %v1333 = vadd.f32 %v1331, %v1332
    %v1334 = vsel %vm1315, %v1314, 0.0
    %v1335 = vadd.f32 %v1333, %v1334
    %v1336 = vrsqrt.pop %v1320
    %v1337 = vmul.f32 %v1320, %v1336
    %vm1338 = vcmp.eq.f32.partialorder %v1320, inf
    %v1339 = vsel %vm1338, %v1320, %v1337
    %vm1340 = vcmp.eq.f32.partialorder %v1320, 0.0
    %v1341 = vand.u32 %v1320, 2147483648
    %v1342 = vsel %vm1340, %v1341, %v1339
    %v1343 = vrsqrt.pop %v1325
    %v1344 = vmul.f32 %v1325, %v1343
    %vm1345 = vcmp.eq.f32.partialorder %v1325, inf
    %v1346 = vsel %vm1345, %v1325, %v1344
    %vm1347 = vcmp.eq.f32.partialorder %v1325, 0.0
    %v1348 = vand.u32 %v1325, 2147483648
    %v1349 = vsel %vm1347, %v1348, %v1346
    %v1350 = vrsqrt.pop %v1330
    %v1351 = vmul.f32 %v1330, %v1350
    %vm1352 = vcmp.eq.f32.partialorder %v1330, inf
    %v1353 = vsel %vm1352, %v1330, %v1351
    %vm1354 = vcmp.eq.f32.partialorder %v1330, 0.0
    %v1355 = vand.u32 %v1330, 2147483648
    %v1356 = vsel %vm1354, %v1355, %v1353
    %v1357 = vrsqrt.pop %v1335
    %v1358 = vmul.f32 %v1335, %v1357
    %vm1359 = vcmp.eq.f32.partialorder %v1335, inf
    %v1360 = vsel %vm1359, %v1335, %v1358
    %vm1361 = vcmp.eq.f32.partialorder %v1335, 0.0
    %v1362 = vand.u32 %v1335, 2147483648
    %v1363 = vsel %vm1361, %v1362, %v1360
    %v1364 = vadd.f32 %v1342, 1e-06
    %v1365 = vadd.f32 %v1349, 1e-06
    %v1366 = vadd.f32 %v1356, 1e-06
    %v1367 = vadd.f32 %v1363, 1e-06
    %v1368 = vsel %vm1315, %v1364, 0.0
    %v1369 = vsel %vm1315, %v1365, 0.0
    %v1370 = vadd.f32 %v1368, %v1369
    %v1371 = vsel %vm1315, %v1366, 0.0
    %v1372 = vadd.f32 %v1370, %v1371
    %v1373 = vsel %vm1315, %v1367, 0.0
    %v1374 = vadd.f32 %v1372, %v1373
    %v1375 = vrot.slane %v1374, 4
    %v1376 = vadd.f32 %v1374, %v1375
    %v1377 = vrot.slane %v1376, 2
    %v1378 = vadd.f32 %v1376, %v1377
    %v1379 = vrot.slane %v1378, 1
    %v1380 = vadd.f32 %v1378, %v1379
    %v1381 = vmul.f32 %v1380, %v881
    %v1382 = vsub.f32 %v1364, %v1381
    %v1383 = vsub.f32 %v1365, %v1381
    %v1384 = vsub.f32 %v1366, %v1381
    %v1385 = vsub.f32 %v1367, %v1381
    %v1386 = vmul.f32 %v1382, %v1382
    %v1387 = vmul.f32 %v1383, %v1383
    %v1388 = vmul.f32 %v1384, %v1384
    %v1389 = vmul.f32 %v1385, %v1385
    %v1390 = vsel %vm1315, %v1386, 0.0
    %v1391 = vsel %vm1315, %v1387, 0.0
    %v1392 = vadd.f32 %v1390, %v1391
    %v1393 = vsel %vm1315, %v1388, 0.0
    %v1394 = vadd.f32 %v1392, %v1393
    %v1395 = vsel %vm1315, %v1389, 0.0
    %v1396 = vadd.f32 %v1394, %v1395
    %v1397 = vrot.slane %v1396, 4
    %v1398 = vadd.f32 %v1396, %v1397
    %v1399 = vrot.slane %v1398, 2
    %v1400 = vadd.f32 %v1398, %v1399
    %v1401 = vrot.slane %v1400, 1
    %v1402 = vadd.f32 %v1400, %v1401
    %v1403 = vmul.f32 %v1402, %v881
    %v1404 = vadd.f32 %v1403, 1e-05
    %v1405 = vrsqrt.pop %v1404
    %v1406 = vmul.f32 %v1382, %v1405
    %v1407 = vmul.f32 %v1383, %v1405
    %v1408 = vmul.f32 %v1384, %v1405
    %v1409 = vmul.f32 %v1385, %v1405
    %v1411 = vlaneseq
    %v1412 = vshrl.u32 %v1411, 7
    %v1413 = vsub.s32 0, %v1412
    %v1414 = vrot.slane %v1301, %v1413
    %v1416 = vmul.f32 %v1406, %v1414
    %v1417 = vmul.f32 %v1407, %v1414
    %v1418 = vmul.f32 %v1408, %v1414
    %v1419 = vmul.f32 %v1409, %v1414
    %v1421 = vlaneseq
    %v1422 = vshrl.u32 %v1421, 7
    %v1423 = vsub.s32 0, %v1422
    %v1424 = vrot.slane %v1302, %v1423
    %v1426 = vadd.f32 %v1416, %v1424
    %v1427 = vadd.f32 %v1417, %v1424
    %v1428 = vadd.f32 %v1418, %v1424
    %v1429 = vadd.f32 %v1419, %v1424
    %v1430 = vrcp.pop %v1364
    %v1431 = vrcp.pop %v1365
    %v1432 = vrcp.pop %v1366
    %v1433 = vrcp.pop %v1367
    %v1434 = vmul.f32 %v1364, %v1430
    %v1435 = vmul.f32 %v1365, %v1431
    %v1436 = vmul.f32 %v1366, %v1432
    %v1437 = vmul.f32 %v1367, %v1433
    %v1438 = vsub.f32 2.0, %v1434
    %v1439 = vsub.f32 2.0, %v1435
    %v1440 = vsub.f32 2.0, %v1436
    %v1441 = vsub.f32 2.0, %v1437
    %v1442 = vmul.f32 %v1430, %v1438
    %v1443 = vmul.f32 %v1431, %v1439
    %v1444 = vmul.f32 %v1432, %v1440
    %v1445 = vmul.f32 %v1433, %v1441
    %v1446 = vmul.f32 %v1426, %v1442
    %v1447 = vmul.f32 %v1427, %v1443
    %v1448 = vmul.f32 %v1428, %v1444
    %v1449 = vmul.f32 %v1429, %v1445
    %v1450 = vmul.f32 %v1243, %v1446
    %v1451 = vmul.f32 %v1248, %v1447
    %v1452 = vmul.f32 %v1253, %v1448
    %v1453 = vmul.f32 %v1258, %v1449
    %v1454 = vmul.f32 %v1263, %v1446
    %v1455 = vmul.f32 %v1268, %v1447
    %v1456 = vmul.f32 %v1273, %v1448
    %v1457 = vmul.f32 %v1278, %v1449
    %v1458 = vmul.f32 %v1283, %v1446
    %v1459 = vmul.f32 %v1288, %v1447
    %v1460 = vmul.f32 %v1293, %v1448
    %v1461 = vmul.f32 %v1298, %v1449
    %1474 = vrot.lane.b32.xlu0 %v1243, 124
    %v1475 = vpop.permute.xlu0 %1474
    %1476 = vrot.lane.b32.xlu0 %v1248, 124
    %v1477 = vpop.permute.xlu0 %1476
    %1478 = vrot.lane.b32.xlu0 %v1253, 124
    %v1479 = vpop.permute.xlu0 %1478
    %1480 = vrot.lane.b32.xlu0 %v1258, 124
    %v1481 = vpop.permute.xlu0 %1480
    %1482 = vrot.lane.b32.xlu0 %v1263, 124
    %v1483 = vpop.permute.xlu0 %1482
    %1484 = vrot.lane.b32.xlu0 %v1268, 124
    %v1485 = vpop.permute.xlu0 %1484
    %1486 = vrot.lane.b32.xlu0 %v1273, 124
    %v1487 = vpop.permute.xlu0 %1486
    %1488 = vrot.lane.b32.xlu0 %v1278, 124
    %v1489 = vpop.permute.xlu0 %1488
    %1490 = vrot.lane.b32.xlu0 %v1283, 124
    %v1491 = vpop.permute.xlu0 %1490
    %1492 = vrot.lane.b32.xlu0 %v1288, 124
    %v1493 = vpop.permute.xlu0 %1492
    %1494 = vrot.lane.b32.xlu0 %v1293, 124
    %v1495 = vpop.permute.xlu0 %1494
    %1496 = vrot.lane.b32.xlu0 %v1298, 124
    %v1497 = vpop.permute.xlu0 %1496
    %v1510 = vmul.f32 %v1450, %v1475
    %v1511 = vmul.f32 %v1451, %v1477
    %v1512 = vmul.f32 %v1452, %v1479
    %v1513 = vmul.f32 %v1453, %v1481
    %v1514 = vmul.f32 %v1454, %v1483
    %v1515 = vmul.f32 %v1455, %v1485
    %v1516 = vmul.f32 %v1456, %v1487
    %v1517 = vmul.f32 %v1457, %v1489
    %v1518 = vmul.f32 %v1458, %v1491
    %v1519 = vmul.f32 %v1459, %v1493
    %v1520 = vmul.f32 %v1460, %v1495
    %v1521 = vmul.f32 %v1461, %v1497
    %v1522 = vsel %vm1315, %v1510, 0.0
    %v1523 = vsel %vm1315, %v1514, 0.0
    %v1524 = vadd.f32 %v1522, %v1523
    %v1525 = vsel %vm1315, %v1518, 0.0
    %v1526 = vadd.f32 %v1524, %v1525
    %v1527 = vsel %vm1315, %v1511, 0.0
    %v1528 = vsel %vm1315, %v1515, 0.0
    %v1529 = vadd.f32 %v1527, %v1528
    %v1530 = vsel %vm1315, %v1519, 0.0
    %v1531 = vadd.f32 %v1529, %v1530
    %v1532 = vsel %vm1315, %v1512, 0.0
    %v1533 = vsel %vm1315, %v1516, 0.0
    %v1534 = vadd.f32 %v1532, %v1533
    %v1535 = vsel %vm1315, %v1520, 0.0
    %v1536 = vadd.f32 %v1534, %v1535
    %v1537 = vsel %vm1315, %v1513, 0.0
    %v1538 = vsel %vm1315, %v1517, 0.0
    %v1539 = vadd.f32 %v1537, %v1538
    %v1540 = vsel %vm1315, %v1521, 0.0
    %v1541 = vadd.f32 %v1539, %v1540
    %vm1542 = vcmask 64544
    %v1543 = vsel %vm1542, %v1303, 0.0
    %v1544 = vsel %vm1542, %v1307, 0.0
    %v1545 = vadd.f32 %v1543, %v1544
    %v1546 = vsel %vm1542, %v1311, 0.0
    %v1547 = vadd.f32 %v1545, %v1546
    %v1548 = vsel %vm1542, %v1304, 0.0
    %v1549 = vsel %vm1542, %v1308, 0.0
    %v1550 = vadd.f32 %v1548, %v1549
    %v1551 = vsel %vm1542, %v1312, 0.0
    %v1552 = vadd.f32 %v1550, %v1551
    %v1553 = vsel %vm1542, %v1305, 0.0
    %v1554 = vsel %vm1542, %v1309, 0.0
    %v1555 = vadd.f32 %v1553, %v1554
    %v1556 = vsel %vm1542, %v1313, 0.0
    %v1557 = vadd.f32 %v1555, %v1556
    %v1558 = vsel %vm1542, %v1306, 0.0
    %v1559 = vsel %vm1542, %v1310, 0.0
    %v1560 = vadd.f32 %v1558, %v1559
    %v1561 = vsel %vm1542, %v1314, 0.0
    %v1562 = vadd.f32 %v1560, %v1561
    %v1563 = vadd.f32 %v1547, 1e-06
    %v1564 = vadd.f32 %v1552, 1e-06
    %v1565 = vadd.f32 %v1557, 1e-06
    %v1566 = vadd.f32 %v1562, 1e-06
    %v1567 = vrcp.pop %v1563
    %v1568 = vrcp.pop %v1564
    %v1569 = vrcp.pop %v1565
    %v1570 = vrcp.pop %v1566
    %v1571 = vmul.f32 %v1563, %v1567
    %v1572 = vmul.f32 %v1564, %v1568
    %v1573 = vmul.f32 %v1565, %v1569
    %v1574 = vmul.f32 %v1566, %v1570
    %v1575 = vsub.f32 2.0, %v1571
    %v1576 = vsub.f32 2.0, %v1572
    %v1577 = vsub.f32 2.0, %v1573
    %v1578 = vsub.f32 2.0, %v1574
    %v1579 = vmul.f32 %v1567, %v1575
    %v1580 = vmul.f32 %v1568, %v1576
    %v1581 = vmul.f32 %v1569, %v1577
    %v1582 = vmul.f32 %v1570, %v1578
    %1587 = vrot.lane.b32.xlu0 %v1579, 124
    %v1588 = vpop.permute.xlu0 %1587
    %1589 = vrot.lane.b32.xlu0 %v1580, 124
    %v1590 = vpop.permute.xlu0 %1589
    %1591 = vrot.lane.b32.xlu0 %v1581, 124
    %v1592 = vpop.permute.xlu0 %1591
    %1593 = vrot.lane.b32.xlu0 %v1582, 124
    %v1594 = vpop.permute.xlu0 %1593
    %v1599 = vmul.f32 %v1526, %v1588
    %v1600 = vmul.f32 %v1531, %v1590
    %v1601 = vmul.f32 %v1536, %v1592
    %v1602 = vmul.f32 %v1541, %v1594
    %vm1603 = vcmp.lt.f32.partialorder %v1526, 0.0
    %vm1604 = vcmp.lt.f32.partialorder %v1531, 0.0
    %vm1605 = vcmp.lt.f32.partialorder %v1536, 0.0
    %vm1606 = vcmp.lt.f32.partialorder %v1541, 0.0
    %v1607 = vsel %vm1603, %v1599, 0.0
    %v1608 = vsel %vm1604, %v1600, 0.0
    %v1609 = vsel %vm1605, %v1601, 0.0
    %v1610 = vsel %vm1606, %v1602, 0.0
    %v1611 = vmul.f32 %v1607, 0.8
    %v1612 = vmul.f32 %v1608, 0.8
    %v1613 = vmul.f32 %v1609, 0.8
    %v1614 = vmul.f32 %v1610, 0.8
    %v1615 = vmul.f32 %v1611, %v1475
    %v1616 = vmul.f32 %v1612, %v1477
    %v1617 = vmul.f32 %v1613, %v1479
    %v1618 = vmul.f32 %v1614, %v1481
    %v1619 = vmul.f32 %v1611, %v1483
    %v1620 = vmul.f32 %v1612, %v1485
    %v1621 = vmul.f32 %v1613, %v1487
    %v1622 = vmul.f32 %v1614, %v1489
    %v1623 = vmul.f32 %v1611, %v1491
    %v1624 = vmul.f32 %v1612, %v1493
    %v1625 = vmul.f32 %v1613, %v1495
    %v1626 = vmul.f32 %v1614, %v1497
    %v1627 = vsub.f32 %v1450, %v1615
    %v1628 = vsub.f32 %v1451, %v1616
    %v1629 = vsub.f32 %v1452, %v1617
    %v1630 = vsub.f32 %v1453, %v1618
    %v1631 = vsub.f32 %v1454, %v1619
    %v1632 = vsub.f32 %v1455, %v1620
    %v1633 = vsub.f32 %v1456, %v1621
    %v1634 = vsub.f32 %v1457, %v1622
    %v1635 = vsub.f32 %v1458, %v1623
    %v1636 = vsub.f32 %v1459, %v1624
    %v1637 = vsub.f32 %v1460, %v1625
    %v1638 = vsub.f32 %v1461, %v1626
    %v1639 = vld [vmem:[%s9] sm:$0xf]
    %v1641 = vsel %vm1315, %v1627, 0
    %v1644 = vsel %vm1315, %v1628, 0
    %v1647 = vsel %vm1315, %v1629, 0
    %v1650 = vsel %vm1315, %v1630, 0
    %v1653 = vsel %vm1315, %v1631, 0
    %v1656 = vsel %vm1315, %v1632, 0
    %v1659 = vsel %vm1315, %v1633, 0
    %v1662 = vsel %vm1315, %v1634, 0
    %v1665 = vsel %vm1315, %v1635, 0
    %v1668 = vsel %vm1315, %v1636, 0
    %v1671 = vsel %vm1315, %v1637, 0
    %v1674 = vsel %vm1315, %v1638, 0
    %vm1676 = vcmask 1043456
    %v1678 = vsel %vm1676, %v1639, 0
    %1680 = vmatprep.subr.mxu0 0.0
    %1681 = vmatpush1.msra.mxu0 %v1678
    %1682 = vmatprep.subr.mxu0 0.0
    %1683 = vmatpush1.msra.mxu0 0.0
    %1684 = vmatprep.subr.mxu0 0.0
    %1685 = vmatpush1.msra.mxu0 0.0
    %1686 = vmatprep.subr.mxu0 0.0
    %1687 = vmatpush1.msra.mxu0 0.0
    %1688 = vmatprep.subr.mxu0 0.0
    %1689 = vmatpush1.msra.mxu0 0.0
    %1690 = vmatprep.subr.mxu0 0.0
    %1691 = vmatpush1.msra.mxu0 0.0
    %1692 = vmatprep.subr.mxu0 0.0
    %1693 = vmatpush1.msra.mxu0 0.0
    %1694 = vmatprep.subr.mxu0 0.0
    %1695 = vmatpush1.msra.mxu0 0.0
    %1696 = vmatprep.subr.mxu0 0.0
    %1697 = vmatpush1.msra.mxu0 0.0
    %1698 = vmatprep.subr.mxu0 0.0
    %1699 = vmatpush1.msra.mxu0 0.0
    %1700 = vmatprep.subr.mxu0 0.0
    %1701 = vmatpush1.msra.mxu0 0.0
    %1702 = vmatprep.subr.mxu0 0.0
    %1703 = vmatpush1.msra.mxu0 0.0
    %1704 = vmatprep.subr.mxu0 0.0
    %1705 = vmatpush1.msra.mxu0 0.0
    %1706 = vmatprep.subr.mxu0 0.0
    %1707 = vmatpush1.msra.mxu0 0.0
    %1708 = vmatprep.subr.mxu0 0.0
    %1709 = vmatpush1.msra.mxu0 0.0
    %1710 = vmatprep.subr.mxu0 0.0
    %1711 = vmatpush1.msra.mxu0 0.0
    %1712 = vmatprep.subr.mxu0 0.0
    %1713 = vmatpush1.msra.mxu0 0.0
    %1714 = vmatprep.subr.mxu0 0.0
    %1715 = vmatpush1.msra.mxu0 0.0
    %1716 = vmatprep.subr.mxu0 0.0
    %1717 = vmatpush1.msra.mxu0 0.0
    %1718 = vmatprep.subr.mxu0 0.0
    %1719 = vmatpush1.msra.mxu0 0.0
    %1720 = vmatprep.subr.mxu0 0.0
    %1721 = vmatpush1.msra.mxu0 0.0
    %1722 = vmatprep.subr.mxu0 0.0
    %1723 = vmatpush1.msra.mxu0 0.0
    %1724 = vmatprep.subr.mxu0 0.0
    %1725 = vmatpush1.msra.mxu0 0.0
    %1726 = vmatprep.subr.mxu0 0.0
    %1727 = vmatpush1.msra.mxu0 0.0
    %1728 = vmatprep.subr.mxu0 0.0
    %1729 = vmatpush1.msra.mxu0 0.0
    %1730 = vmatprep.subr.mxu0 0.0
    %1731 = vmatpush1.msra.mxu0 0.0
    %1732 = vmatprep.subr.mxu0 0.0
    %1733 = vmatpush1.msra.mxu0 0.0
    %1734 = vmatprep.subr.mxu0 0.0
    %1735 = vmatpush1.msra.mxu0 0.0
    %1736 = vmatprep.subr.mxu0 0.0
    %1737 = vmatpush1.msra.mxu0 0.0
    %1738 = vmatprep.subr.mxu0 0.0
    %1739 = vmatpush1.msra.mxu0 0.0
    %1740 = vmatprep.subr.mxu0 0.0
    %1741 = vmatpush1.msra.mxu0 0.0
    %1742 = vmatprep.subr.mxu0 0.0
    %1743 = vmatpush1.msra.mxu0 0.0
    %1744 = vmatprep.mubr.f32.mxu0 0.0
    %1745 = vmatmul.mubr.f32.gmra.mrb[0].mxu0 %v1641
    %v1746 = vpop.f32.mrb[0].mxu0
    %v1747 = vadd.f32 0.0, %v1746
    %v1748 = vpop.f32.mrb[0].mxu0
    %1749 = vmatprep.mubr.f32.mxu0 0.0
    %1750 = vmatmul.mubr.f32.gmra.mrb[0].mxu0 %v1644
    %v1751 = vpop.f32.mrb[0].mxu0
    %v1752 = vadd.f32 0.0, %v1751
    %v1753 = vpop.f32.mrb[0].mxu0
    %1754 = vmatprep.mubr.f32.mxu0 0.0
    %1755 = vmatmul.mubr.f32.gmra.mrb[0].mxu0 %v1647
    %v1756 = vpop.f32.mrb[0].mxu0
    %v1757 = vadd.f32 0.0, %v1756
    %v1758 = vpop.f32.mrb[0].mxu0
    %1759 = vmatprep.mubr.f32.mxu0 0.0
    %1760 = vmatmul.mubr.f32.gmra.mrb[0].mxu0 %v1650
    %v1761 = vpop.f32.mrb[0].mxu0
    %v1762 = vadd.f32 0.0, %v1761
    %v1763 = vpop.f32.mrb[0].mxu0
    %1764 = vmatprep.mubr.f32.mxu0 0.0
    %1765 = vmatmul.mubr.f32.gmra.mrb[0].mxu0 %v1653
    %v1766 = vpop.f32.mrb[0].mxu0
    %v1767 = vadd.f32 0.0, %v1766
    %v1768 = vpop.f32.mrb[0].mxu0
    %1769 = vmatprep.mubr.f32.mxu0 0.0
    %1770 = vmatmul.mubr.f32.gmra.mrb[0].mxu0 %v1656
    %v1771 = vpop.f32.mrb[0].mxu0
    %v1772 = vadd.f32 0.0, %v1771
    %v1773 = vpop.f32.mrb[0].mxu0
    %1774 = vmatprep.mubr.f32.mxu0 0.0
    %1775 = vmatmul.mubr.f32.gmra.mrb[0].mxu0 %v1659
    %v1776 = vpop.f32.mrb[0].mxu0
    %v1777 = vadd.f32 0.0, %v1776
    %v1778 = vpop.f32.mrb[0].mxu0
    %1779 = vmatprep.mubr.f32.mxu0 0.0
    %1780 = vmatmul.mubr.f32.gmra.mrb[0].mxu0 %v1662
    %v1781 = vpop.f32.mrb[0].mxu0
    %v1782 = vadd.f32 0.0, %v1781
    %v1783 = vpop.f32.mrb[0].mxu0
    %1784 = vmatprep.mubr.f32.mxu0 0.0
    %1785 = vmatmul.mubr.f32.gmra.mrb[0].mxu0 %v1665
    %v1786 = vpop.f32.mrb[0].mxu0
    %v1787 = vadd.f32 0.0, %v1786
    %v1788 = vpop.f32.mrb[0].mxu0
    %1789 = vmatprep.mubr.f32.mxu0 0.0
    %1790 = vmatmul.mubr.f32.gmra.mrb[0].mxu0 %v1668
    %v1791 = vpop.f32.mrb[0].mxu0
    %v1792 = vadd.f32 0.0, %v1791
    %v1793 = vpop.f32.mrb[0].mxu0
    %1794 = vmatprep.mubr.f32.mxu0 0.0
    %1795 = vmatmul.mubr.f32.gmra.mrb[0].mxu0 %v1671
    %v1796 = vpop.f32.mrb[0].mxu0
    %v1797 = vadd.f32 0.0, %v1796
    %v1798 = vpop.f32.mrb[0].mxu0
    %1799 = vmatprep.mubr.f32.mxu0 0.0
    %1800 = vmatmul.mubr.f32.gmra.mrb[0].mxu0 %v1674
    %v1801 = vpop.f32.mrb[0].mxu0
    %v1802 = vadd.f32 0.0, %v1801
    %v1803 = vpop.f32.mrb[0].mxu0
    %1804 = vdwg.mxu0
    %1805 = vset.pattern.permute.xlu0 16
    %1806 = vperm.xlu0 %1805, %v790
    %v1807 = vpop.permute.xlu0 %1806
    %1809 = vset.pattern.permute.xlu0 16
    %1810 = vperm.xlu0 %1809, %v791
    %v1811 = vpop.permute.xlu0 %1810
    %1813 = vset.pattern.permute.xlu0 16
    %1814 = vperm.xlu0 %1813, %v792
    %v1815 = vpop.permute.xlu0 %1814
    %1817 = vset.pattern.permute.xlu0 16
    %1818 = vperm.xlu0 %1817, %v793
    %v1819 = vpop.permute.xlu0 %1818
    %1821 = vset.pattern.permute.xlu0 16
    %1822 = vperm.xlu0 %1821, %v794
    %v1823 = vpop.permute.xlu0 %1822
    %1825 = vset.pattern.permute.xlu0 16
    %1826 = vperm.xlu0 %1825, %v795
    %v1827 = vpop.permute.xlu0 %1826
    %1829 = vset.pattern.permute.xlu0 16
    %1830 = vperm.xlu0 %1829, %v796
    %v1831 = vpop.permute.xlu0 %1830
    %1833 = vset.pattern.permute.xlu0 16
    %1834 = vperm.xlu0 %1833, %v797
    %v1835 = vpop.permute.xlu0 %1834
    %1837 = vset.pattern.permute.xlu0 16
    %1838 = vperm.xlu0 %1837, %v798
    %v1839 = vpop.permute.xlu0 %1838
    %1841 = vset.pattern.permute.xlu0 16
    %1842 = vperm.xlu0 %1841, %v799
    %v1843 = vpop.permute.xlu0 %1842
    %1845 = vset.pattern.permute.xlu0 16
    %1846 = vperm.xlu0 %1845, %v800
    %v1847 = vpop.permute.xlu0 %1846
    %1849 = vset.pattern.permute.xlu0 16
    %1850 = vperm.xlu0 %1849, %v801
    %v1851 = vpop.permute.xlu0 %1850
    %v1853 = vmul.f32 %v1747, %v1807
    %v1854 = vmul.f32 %v1752, %v1811
    %v1855 = vmul.f32 %v1757, %v1815
    %v1856 = vmul.f32 %v1762, %v1819
    %v1857 = vmul.f32 %v1767, %v1823
    %v1858 = vmul.f32 %v1772, %v1827
    %v1859 = vmul.f32 %v1777, %v1831
    %v1860 = vmul.f32 %v1782, %v1835
    %v1861 = vmul.f32 %v1787, %v1839
    %v1862 = vmul.f32 %v1792, %v1843
    %v1863 = vmul.f32 %v1797, %v1847
    %v1864 = vmul.f32 %v1802, %v1851
    %vm1865 = vcmask 23552
    %v1866 = vsel %vm1865, %v1853, 0.0
    %v1867 = vsel %vm1865, %v1857, 0.0
    %v1868 = vadd.f32 %v1866, %v1867
    %v1869 = vsel %vm1865, %v1861, 0.0
    %v1870 = vadd.f32 %v1868, %v1869
    %v1871 = vsel %vm1865, %v1854, 0.0
    %v1872 = vsel %vm1865, %v1858, 0.0
    %v1873 = vadd.f32 %v1871, %v1872
    %v1874 = vsel %vm1865, %v1862, 0.0
    %v1875 = vadd.f32 %v1873, %v1874
    %v1876 = vsel %vm1865, %v1855, 0.0
    %v1877 = vsel %vm1865, %v1859, 0.0
    %v1878 = vadd.f32 %v1876, %v1877
    %v1879 = vsel %vm1865, %v1863, 0.0
    %v1880 = vadd.f32 %v1878, %v1879
    %v1881 = vsel %vm1865, %v1856, 0.0
    %v1882 = vsel %vm1865, %v1860, 0.0
    %v1883 = vadd.f32 %v1881, %v1882
    %v1884 = vsel %vm1865, %v1864, 0.0
    %v1885 = vadd.f32 %v1883, %v1884
    %v1886 = vsel %vm1865, %v1870, -inf
    %v1887 = vsel %vm1865, %v1875, -inf
    %v1888 = vmax.f32 %v1886, %v1887
    %v1889 = vrot.slane %v1888, 4
    %v1890 = vmax.f32 %v1888, %v1889
    %v1891 = vrot.slane %v1890, 2
    %v1892 = vmax.f32 %v1890, %v1891
    %v1893 = vrot.slane %v1892, 1
    %v1894 = vmax.f32 %v1892, %v1893
    %v1895 = vsel %vm1865, %v1880, -inf
    %v1896 = vsel %vm1865, %v1885, -inf
    %v1897 = vmax.f32 %v1895, %v1896
    %v1898 = vrot.slane %v1897, 4
    %v1899 = vmax.f32 %v1897, %v1898
    %v1900 = vrot.slane %v1899, 2
    %v1901 = vmax.f32 %v1899, %v1900
    %v1902 = vrot.slane %v1901, 1
    %v1903 = vmax.f32 %v1901, %v1902
    %v1904 = vsub.f32 %v1870, %v1894
    %v1905 = vsub.f32 %v1875, %v1894
    %v1906 = vsub.f32 %v1880, %v1903
    %v1907 = vsub.f32 %v1885, %v1903
    %v1908 = vmul.f32 %v1904, 1.442695
    %v1909 = vpow.pop %v1908
    %v1910 = vmul.f32 %v1905, 1.442695
    %v1911 = vpow.pop %v1910
    %v1912 = vmul.f32 %v1906, 1.442695
    %v1913 = vpow.pop %v1912
    %v1914 = vmul.f32 %v1907, 1.442695
    %v1915 = vpow.pop %v1914
    %v1916 = vsel %vm1865, %v1909, 0.0
    %v1917 = vsel %vm1865, %v1911, 0.0
    %v1918 = vadd.f32 %v1916, %v1917
    %v1919 = vrot.slane %v1918, 4
    %v1920 = vadd.f32 %v1918, %v1919
    %v1921 = vrot.slane %v1920, 2
    %v1922 = vadd.f32 %v1920, %v1921
    %v1923 = vrot.slane %v1922, 1
    %v1924 = vadd.f32 %v1922, %v1923
    %v1925 = vsel %vm1865, %v1913, 0.0
    %v1926 = vsel %vm1865, %v1915, 0.0
    %v1927 = vadd.f32 %v1925, %v1926
    %v1928 = vrot.slane %v1927, 4
    %v1929 = vadd.f32 %v1927, %v1928
    %v1930 = vrot.slane %v1929, 2
    %v1931 = vadd.f32 %v1929, %v1930
    %v1932 = vrot.slane %v1931, 1
    %v1933 = vadd.f32 %v1931, %v1932
    %v1934 = vrcp.pop %v1924
    %v1935 = vrcp.pop %v1933
    %v1936 = vmul.f32 %v1924, %v1934
    %v1937 = vmul.f32 %v1933, %v1935
    %v1938 = vsub.f32 2.0, %v1936
    %v1939 = vsub.f32 2.0, %v1937
    %v1940 = vmul.f32 %v1934, %v1938
    %v1941 = vmul.f32 %v1935, %v1939
    %v1942 = vmul.f32 %v1909, %v1940
    %v1943 = vmul.f32 %v1911, %v1940
    %v1944 = vmul.f32 %v1913, %v1941
    %v1945 = vmul.f32 %v1915, %v1941
    %1947 = vset.pattern.permute.xlu0 0
    %1948 = vperm.xlu0 %1947, %v1942
    %v1949 = vpop.permute.xlu0 %1948
    %1952 = vset.pattern.permute.xlu0 0
    %1953 = vperm.xlu0 %1952, %v1943
    %v1954 = vpop.permute.xlu0 %1953
    %1957 = vset.pattern.permute.xlu0 0
    %1958 = vperm.xlu0 %1957, %v1944
    %v1959 = vpop.permute.xlu0 %1958
    %1962 = vset.pattern.permute.xlu0 0
    %1963 = vperm.xlu0 %1962, %v1945
    %v1964 = vpop.permute.xlu0 %1963
    %v1966 = vmul.f32 %v1949, %v36
    %v1967 = vmul.f32 %v1954, %v37
    %v1968 = vmul.f32 %v1959, %v38
    %v1969 = vmul.f32 %v1964, %v39
    %v1970 = vsel %vm49, %v1966, 0.0
    %v1971 = vsel %vm49, %v1967, 0.0
    %v1972 = vadd.f32 %v1970, %v1971
    %v1973 = vrot.slane %v1972, 4
    %v1974 = vadd.f32 %v1972, %v1973
    %v1975 = vrot.slane %v1974, 2
    %v1976 = vadd.f32 %v1974, %v1975
    %v1977 = vrot.slane %v1976, 1
    %v1978 = vadd.f32 %v1976, %v1977
    %v1979 = vsel %vm49, %v1968, 0.0
    %v1980 = vsel %vm49, %v1969, 0.0
    %v1981 = vadd.f32 %v1979, %v1980
    %v1982 = vrot.slane %v1981, 4
    %v1983 = vadd.f32 %v1981, %v1982
    %v1984 = vrot.slane %v1983, 2
    %v1985 = vadd.f32 %v1983, %v1984
    %v1986 = vrot.slane %v1985, 1
    %v1987 = vadd.f32 %v1985, %v1986
    %1988 = vset.pattern.permute.xlu0 1
    %1989 = vperm.xlu0 %1988, %v1942
    %v1990 = vpop.permute.xlu0 %1989
    %1992 = vset.pattern.permute.xlu0 1
    %1993 = vperm.xlu0 %1992, %v1943
    %v1994 = vpop.permute.xlu0 %1993
    %1996 = vset.pattern.permute.xlu0 1
    %1997 = vperm.xlu0 %1996, %v1944
    %v1998 = vpop.permute.xlu0 %1997
    %2000 = vset.pattern.permute.xlu0 1
    %2001 = vperm.xlu0 %2000, %v1945
    %v2002 = vpop.permute.xlu0 %2001
    %v2004 = vmul.f32 %v1990, %v40
    %v2005 = vmul.f32 %v1994, %v41
    %v2006 = vmul.f32 %v1998, %v42
    %v2007 = vmul.f32 %v2002, %v43
    %v2008 = vsel %vm49, %v2004, 0.0
    %v2009 = vsel %vm49, %v2005, 0.0
    %v2010 = vadd.f32 %v2008, %v2009
    %v2011 = vrot.slane %v2010, 4
    %v2012 = vadd.f32 %v2010, %v2011
    %v2013 = vrot.slane %v2012, 2
    %v2014 = vadd.f32 %v2012, %v2013
    %v2015 = vrot.slane %v2014, 1
    %v2016 = vadd.f32 %v2014, %v2015
    %v2017 = vsel %vm49, %v2006, 0.0
    %v2018 = vsel %vm49, %v2007, 0.0
    %v2019 = vadd.f32 %v2017, %v2018
    %v2020 = vrot.slane %v2019, 4
    %v2021 = vadd.f32 %v2019, %v2020
    %v2022 = vrot.slane %v2021, 2
    %v2023 = vadd.f32 %v2021, %v2022
    %v2024 = vrot.slane %v2023, 1
    %v2025 = vadd.f32 %v2023, %v2024
    %2026 = vset.pattern.permute.xlu0 2
    %2027 = vperm.xlu0 %2026, %v1942
    %v2028 = vpop.permute.xlu0 %2027
    %2030 = vset.pattern.permute.xlu0 2
    %2031 = vperm.xlu0 %2030, %v1943
    %v2032 = vpop.permute.xlu0 %2031
    %2034 = vset.pattern.permute.xlu0 2
    %2035 = vperm.xlu0 %2034, %v1944
    %v2036 = vpop.permute.xlu0 %2035
    %2038 = vset.pattern.permute.xlu0 2
    %2039 = vperm.xlu0 %2038, %v1945
    %v2040 = vpop.permute.xlu0 %2039
    %v2042 = vmul.f32 %v2028, %v44
    %v2043 = vmul.f32 %v2032, %v45
    %v2044 = vmul.f32 %v2036, %v46
    %v2045 = vmul.f32 %v2040, %v47
    %v2046 = vsel %vm49, %v2042, 0.0
    %v2047 = vsel %vm49, %v2043, 0.0
    %v2048 = vadd.f32 %v2046, %v2047
    %v2049 = vrot.slane %v2048, 4
    %v2050 = vadd.f32 %v2048, %v2049
    %v2051 = vrot.slane %v2050, 2
    %v2052 = vadd.f32 %v2050, %v2051
    %v2053 = vrot.slane %v2052, 1
    %v2054 = vadd.f32 %v2052, %v2053
    %v2055 = vsel %vm49, %v2044, 0.0
    %v2056 = vsel %vm49, %v2045, 0.0
    %v2057 = vadd.f32 %v2055, %v2056
    %v2058 = vrot.slane %v2057, 4
    %v2059 = vadd.f32 %v2057, %v2058
    %v2060 = vrot.slane %v2059, 2
    %v2061 = vadd.f32 %v2059, %v2060
    %v2062 = vrot.slane %v2061, 1
    %v2063 = vadd.f32 %v2061, %v2062
    %v2070 = vrot.slane %v1987, 7
    %v2071 = vsel %vm630, %v2070, %v1978
    %v2072 = vrot.slane %v2025, 7
    %v2073 = vsel %vm630, %v2072, %v2016
    %v2074 = vrot.slane %v2063, 7
    %v2075 = vsel %vm630, %v2074, %v2054
    %vm2079 = vcmask 58368
    %2080 = vst.msk [vmem:[#allocation2] sm:$0x3] %vm2079, %v2071
    %2081 = vst.msk [vmem:[#allocation2 + $0x2] sm:$0x3] %vm2079, %v2073
    %2082 = vst.msk [vmem:[#allocation2 + $0x4] sm:$0x3] %vm2079, %v2075
    // Predicated region
    $region42: #{tpu_custom_call.1} parent=1 // pred_check
      _
    $region43: #{tpu_custom_call.1} parent=1 // pred_check_branch
      %2084 = sbr.rel (0) target = $region45
    $region44: #{tpu_custom_call.1} parent=1 // pred_region
      %s2086 = ssub.s32 96, 96
      %2087 = vsyncadd [#allocation3], %s2086
      %s2088 = sshll.u32 [#allocation2], 4
      %s2089 = int_to_ptr.vmem [resolvable:$true] %s2088
      %2094 = dma.vmem_to_hbm [thread:$0]  %s2089, 96, %s10, [#allocation3], 32, 32, 2
    $region45: #{tpu_custom_call.1} parent=1 // pred_fallthru
      _
    // Predicated region
    $region46: #{tpu_custom_call.1} parent=1 // pred_check
      _
    $region47: #{tpu_custom_call.1} parent=1 // pred_check_branch
      %2096 = sbr.rel (0) target = $region49
    $region48: #{tpu_custom_call.1} parent=1 // pred_region
      %2097 = dma.done [#allocation3], 96
    $region49: #{tpu_custom_call.1} parent=1 // pred_fallthru
      _
    %2098 = vsyncpa [#allocation3], 1

</llo_original>
